<compile_context>
chip_gen: v5e
topology: v5e:2x2
jax: 0.10.0
libtpu: 0.0.40
codegen_flags: <defaults>
</compile_context>

<pallas_src>
import functools

import jax
import jax.numpy as jnp
from jax.experimental import pallas as pl
from jax.experimental.pallas import tpu as pltpu

BN_EPS = 1e-5


# --------------------------------------------------------------------------- #
# Kernel: one output-feature tile of  Linear(no bias) -> BatchNorm1d -> [ReLU] #
# --------------------------------------------------------------------------- #
def _linear_bn_kernel(x_ref, w_ref, g_ref, be_ref, o_ref, *, relu):
    n = x_ref.shape[0]
    # bf16 MXU operands (x is already bf16), f32 accumulation.
    y = jnp.dot(x_ref[...], w_ref[...],
                preferred_element_type=jnp.float32)            # [N, bn] f32

    # Full-batch, per-feature BN stats in a single sweep over y (f32).
    inv_n = jnp.float32(1.0 / n)
    s1 = jnp.sum(y, axis=0, keepdims=True)
    s2 = jnp.sum(y * y, axis=0, keepdims=True)
    mean = s1 * inv_n
    var = jnp.maximum(s2 * inv_n - mean * mean, 0.0)

    # Fold BN affine into a single per-feature scale/shift (2 ops/elem).
    scale = g_ref[...] * jax.lax.rsqrt(var + BN_EPS)           # [1, bn]
    shift = be_ref[...] - mean * scale                         # [1, bn]
    out = y * scale + shift
    if relu:
        out = jnp.maximum(out, 0.0)
    o_ref[...] = out.astype(o_ref.dtype)


# --------------------------------------------------------------------------- #
# Tiling / VMEM planning                                                      #
# --------------------------------------------------------------------------- #
def _pick_block_n(d_out, max_block_n, *, min_tiles=2):
    """Output-feature tile width.

    Prefers multiples of 256 (v6e/v7x 2x256 MXU), falls back to multiples of
    128, and caps the tile so the grid has at least `min_tiles` tiles (v7x
    megacore split).  Falls back to the full dim if d_out is not 128-divisible.
    """
    cap = min(max_block_n, d_out)
    if d_out >= min_tiles * 128:
        cap = min(cap, d_out // min_tiles)
    for step in (256, 128):
        b = cap - cap % step
        while b >= step:
            if d_out % b == 0:
                return b
            b -= step
    return d_out  # non-128-divisible width: single full (masked-store) tile


def _vmem_cap_bytes():
    """Generation-aware scoped-VMEM cap (~60 MiB on v7x, ~120 MiB on v5e/v6e)."""
    try:
        phys = int(pltpu.get_tpu_info().vmem_capacity_bytes)
    except Exception:
        phys = 128 << 20
    return int(min(phys - (4 << 20), 120 << 20))


def _plan_vmem(n, d_in, d_out, block_n, x_itemsize, out_itemsize):
    """Pick the weight-tile buffer depth and an honest vmem_limit_bytes."""
    cap = _vmem_cap_bytes()
    x_b = n * d_in * x_itemsize            # resident activation, single buffer
    vec_b = 2 * 2 * block_n * 4            # gamma + beta, double-buffered
    o_b = 2 * n * block_n * out_itemsize   # output tile, double-buffered
    w_tile = d_in * block_n * 2            # bf16 weight column tile
    headroom = 8 << 20                     # compiler-internal scratch
    n_tiles = max(d_out // block_n, 1)
    w_bufs = 3 if (n_tiles >= 3 and
                   x_b + vec_b + o_b + 3 * w_tile + headroom <= cap) else 2
    limit = min(max(x_b + vec_b + o_b + w_bufs * w_tile + headroom, 16 << 20), cap)
    return w_bufs, int(limit)


# --------------------------------------------------------------------------- #
# Per-layer wrapper: grid over output-feature tiles                           #
# --------------------------------------------------------------------------- #
def _linear_bn(x_bf16, w_bf16, gamma, beta, *, relu, out_dtype, max_block_n):
    n, d_in = x_bf16.shape
    d_out = w_bf16.shape[1]
    block_n = _pick_block_n(d_out, max_block_n)
    grid = (d_out // block_n,)
    out_itemsize = jnp.dtype(out_dtype).itemsize
    w_bufs, vmem_limit = _plan_vmem(n, d_in, d_out, block_n,
                                    x_bf16.dtype.itemsize, out_itemsize)
    kernel = functools.partial(_linear_bn_kernel, relu=relu)
    return pl.pallas_call(
        kernel,
        out_shape=jax.ShapeDtypeStruct((n, d_out), out_dtype),
        grid_spec=pltpu.PrefetchScalarGridSpec(
            num_scalar_prefetch=0,
            grid=grid,
            in_specs=[
                # Activation: constant block index -> fetched once, resident,
                # single-buffered (no point double-buffering an invariant).
                pl.BlockSpec((n, d_in), lambda j: (0, 0),
                             pipeline_mode=pl.Buffered(1)),
                # Weight column tile (bf16), streamed across the grid with
                # 2- or 3-deep buffering depending on the VMEM budget.
                pl.BlockSpec((d_in, block_n), lambda j: (0, j),
                             pipeline_mode=pl.Buffered(w_bufs)),
                pl.BlockSpec((1, block_n), lambda j: (0, j)),   # gamma tile
                pl.BlockSpec((1, block_n), lambda j: (0, j)),   # beta tile
            ],
            out_specs=pl.BlockSpec((n, block_n), lambda j: (0, j)),
        ),
        compiler_params=pltpu.CompilerParams(
            dimension_semantics=("parallel",),          # megacore split on v7x
            vmem_limit_bytes=vmem_limit,
        ),
    )(x_bf16, w_bf16, gamma, beta)


def projection_head(x, params, *, max_block_n=512):
    """x: [N, d_input] f32.  params: bf16 W[d_in, d_out], f32 gamma/beta.
    Biases b1/b2/b3 exist in params only for the reference check: training-mode
    BatchNorm cancels a per-feature bias exactly, so the kernels never load them.
    Inter-layer activations are bf16; the final output is f32."""
    h = x.astype(jnp.bfloat16)                       # one cast, outside kernels
    h = _linear_bn(h, params["w1"], params["g1"], params["be1"],
                   relu=True, out_dtype=jnp.bfloat16, max_block_n=max_block_n)
    h = _linear_bn(h, params["w2"], params["g2"], params["be2"],
                   relu=True, out_dtype=jnp.bfloat16, max_block_n=max_block_n)
    return _linear_bn(h, params["w3"], params["g3"], params["be3"],
                      relu=False, out_dtype=jnp.float32, max_block_n=max_block_n)


# --------------------------------------------------------------------------- #
# Parameters and pure-JAX reference                                           #
# --------------------------------------------------------------------------- #
def init_params(key, d_input, d_hidden, d_output):
    """Deterministic synthetic parameters matching the PyTorch module's shapes."""
    # layer3 is Linear(d_hidden, d_output) followed by BatchNorm1d(d_hidden);
    # this only type-checks (as in the PyTorch defaults) when they are equal.
    assert d_output == d_hidden, "layer3 BatchNorm1d(d_hidden) requires d_output == d_hidden"
    ks = jax.random.split(key, 12)

    def linear(kw, kb, d_in, d_out):
        bound = float(d_in) ** -0.5
        w = jax.random.uniform(kw, (d_in, d_out), jnp.float32, -bound, bound)
        b = jax.random.uniform(kb, (1, d_out), jnp.float32, -bound, bound)
        # Weights fed to the kernel in bf16 (f32 accumulation on the MXU).
        return w.astype(jnp.bfloat16), b

    def affine(kg, kb, d):
        g = jax.random.uniform(kg, (1, d), jnp.float32, 0.5, 1.5)
        be = jax.random.uniform(kb, (1, d), jnp.float32, -0.5, 0.5)
        return g, be

    w1, b1 = linear(ks[0], ks[1], d_input, d_hidden)
    w2, b2 = linear(ks[2], ks[3], d_hidden, d_hidden)
    w3, b3 = linear(ks[4], ks[5], d_hidden, d_output)
    g1, be1 = affine(ks[6], ks[7], d_hidden)
    g2, be2 = affine(ks[8], ks[9], d_hidden)
    g3, be3 = affine(ks[10], ks[11], d_hidden)
    return {
        "w1": w1, "b1": b1, "g1": g1, "be1": be1,
        "w2": w2, "b2": b2, "g2": g2, "be2": be2,
        "w3": w3, "b3": b3, "g3": g3, "be3": be3,
    }


def reference(x, p):
    """Pure-JAX reference with the module's exact math: Linear WITH bias,
    centered batch variance (training-mode BatchNorm1d, eps=1e-5), un-folded
    affine.  It uses the same numeric conventions as the kernel pipeline
    (bf16 matmul inputs with f32 accumulation, bf16 inter-layer activations)
    so the comparison isolates the kernel's structural choices: bias drop,
    E[y^2]-mean^2 fusion, folded scale/shift, feature tiling."""
    def layer(h, w, b, g, be, relu):
        y = jnp.dot(h.astype(jnp.bfloat16), w,
                    preferred_element_type=jnp.float32) + b
        mean = jnp.mean(y, axis=0, keepdims=True)
        var = jnp.mean((y - mean) ** 2, axis=0, keepdims=True)
        out = (y - mean) * jax.lax.rsqrt(var + BN_EPS) * g + be
        return jnp.maximum(out, 0.0) if relu else out

    h = layer(x, p["w1"], p["b1"], p["g1"], p["be1"], True)
    h = h.astype(jnp.bfloat16)          # mimic the kernel's bf16 HBM round-trip
    h = layer(h, p["w2"], p["b2"], p["g2"], p["be2"], True)
    h = h.astype(jnp.bfloat16)
    return layer(h, p["w3"], p["b3"], p["g3"], p["be3"], False)


# --------------------------------------------------------------------------- #
if __name__ == "__main__":
    # Small but hardware-friendly shapes: batch and feature dims are multiples
    # of 256, so the MXU tiles are full on v6e/v7x and every store is a
    # full-lane vst.  With max_block_n=256 each hidden layer has 2 feature
    # tiles, exercising the grid, the single-buffered resident activation and
    # the "parallel" dimension semantics.
    N, D_IN, D_HID, D_OUT = 256, 256, 512, 512

    key = jax.random.PRNGKey(0)
    kx, kp = jax.random.split(key)
    x = jax.random.normal(kx, (N, D_IN), jnp.float32)
    params = init_params(kp, D_IN, D_HID, D_OUT)

    out = projection_head(x, params, max_block_n=256)
    out = jax.block_until_ready(out)

    ref = reference(x, params)
    assert out.shape == (N, D_OUT), out.shape
    max_err = float(jnp.max(jnp.abs(out - ref.astype(jnp.float32))))
    assert max_err < 3e-2, max_err

    print("KERNEL_OK")
</pallas_src>

<mosaic_0001>
module attributes {stable_mosaic.version = 11 : i64} {
  func.func @_linear_bn_kernel(%arg0: i32, %arg1: memref<256x256xbf16, #tpu.memory_space<vmem>>, %arg2: memref<256x256xbf16, #tpu.memory_space<vmem>>, %arg3: memref<1x256xf32, #tpu.memory_space<vmem>>, %arg4: memref<1x256xf32, #tpu.memory_space<vmem>>, %arg5: memref<256x256xbf16, #tpu.memory_space<vmem>>) attributes {dimension_semantics = [#tpu.dimension_semantics<parallel>], iteration_bounds = array<i64: 2>, scalar_prefetch = 0 : i64, scratch_operands = 0 : i64, tpu.core_type = #tpu.core_type<tc>, window_params = [{pipeline_mode = #tpu.pipeline_mode<synchronous>, transform_indices = @transform_0, window_bounds = array<i64: 256, 256>}, {pipeline_mode = #tpu.pipeline_mode<double_buffered>, transform_indices = @transform_1, window_bounds = array<i64: 256, 256>}, {transform_indices = @transform_2, window_bounds = array<i64: 1, 256>}, {transform_indices = @transform_3, window_bounds = array<i64: 1, 256>}, {transform_indices = @transform_4, window_bounds = array<i64: 256, 256>}]} {
    %c0 = arith.constant 0 : index
    %c0_0 = arith.constant 0 : index
    %0 = vector.load %arg1[%c0, %c0_0] : memref<256x256xbf16, #tpu.memory_space<vmem>>, vector<256x256xbf16>
    %c0_1 = arith.constant 0 : index
    %c0_2 = arith.constant 0 : index
    %1 = vector.load %arg2[%c0_1, %c0_2] : memref<256x256xbf16, #tpu.memory_space<vmem>>, vector<256x256xbf16>
    %cst = arith.constant dense<0.000000e+00> : vector<256x256xf32>
    %2 = tpu.matmul %0, %1, %cst {dimension_numbers = #tpu.dot_dimension_numbers<[1], [0], [0], [1], [0, 0, 1, 1], [], []>} : vector<256x256xbf16>, vector<256x256xbf16>, vector<256x256xf32> -> vector<256x256xf32>
    %cst_3 = arith.constant dense<0.000000e+00> : vector<256xf32>
    %3 = vector.multi_reduction <add>, %2, %cst_3 [0] : vector<256x256xf32> to vector<256xf32>
    %4 = vector.shape_cast %3 : vector<256xf32> to vector<1x256xf32>
    %5 = arith.mulf %2, %2 : vector<256x256xf32>
    %cst_4 = arith.constant dense<0.000000e+00> : vector<256xf32>
    %6 = vector.multi_reduction <add>, %5, %cst_4 [0] : vector<256x256xf32> to vector<256xf32>
    %7 = vector.shape_cast %6 : vector<256xf32> to vector<1x256xf32>
    %cst_5 = arith.constant 3.906250e-03 : f32
    %8 = vector.broadcast %cst_5 : f32 to vector<1x256xf32>
    %9 = arith.mulf %4, %8 : vector<1x256xf32>
    %cst_6 = arith.constant 3.906250e-03 : f32
    %10 = vector.broadcast %cst_6 : f32 to vector<1x256xf32>
    %11 = arith.mulf %7, %10 : vector<1x256xf32>
    %12 = arith.mulf %9, %9 : vector<1x256xf32>
    %13 = arith.subf %11, %12 : vector<1x256xf32>
    %cst_7 = arith.constant 0.000000e+00 : f32
    %14 = vector.broadcast %cst_7 : f32 to vector<1x256xf32>
    %15 = arith.maximumf %13, %14 : vector<1x256xf32>
    %c0_8 = arith.constant 0 : index
    %c0_9 = arith.constant 0 : index
    %16 = vector.load %arg3[%c0_8, %c0_9] : memref<1x256xf32, #tpu.memory_space<vmem>>, vector<1x256xf32>
    %cst_10 = arith.constant 9.99999974E-6 : f32
    %17 = vector.broadcast %cst_10 : f32 to vector<1x256xf32>
    %18 = arith.addf %15, %17 : vector<1x256xf32>
    %19 = math.rsqrt %18 : vector<1x256xf32>
    %20 = arith.mulf %16, %19 : vector<1x256xf32>
    %c0_11 = arith.constant 0 : index
    %c0_12 = arith.constant 0 : index
    %21 = vector.load %arg4[%c0_11, %c0_12] : memref<1x256xf32, #tpu.memory_space<vmem>>, vector<1x256xf32>
    %22 = arith.mulf %9, %20 : vector<1x256xf32>
    %23 = arith.subf %21, %22 : vector<1x256xf32>
    %24 = vector.broadcast %20 : vector<1x256xf32> to vector<256x256xf32>
    %25 = arith.mulf %2, %24 : vector<256x256xf32>
    %26 = vector.broadcast %23 : vector<1x256xf32> to vector<256x256xf32>
    %27 = arith.addf %25, %26 : vector<256x256xf32>
    %cst_13 = arith.constant 0.000000e+00 : f32
    %28 = vector.broadcast %cst_13 : f32 to vector<256x256xf32>
    %29 = arith.maximumf %27, %28 : vector<256x256xf32>
    %30 = arith.truncf %29 : vector<256x256xf32> to vector<256x256xbf16>
    %c0_14 = arith.constant 0 : index
    %c0_15 = arith.constant 0 : index
    %31 = vector.load %arg5[%c0_14, %c0_15] : memref<256x256xbf16, #tpu.memory_space<vmem>>, vector<256x256xbf16>
    tpu.vector_store %arg5[%c0_14, %c0_15], %30 {strides = array<i32>} : memref<256x256xbf16, #tpu.memory_space<vmem>>, vector<256x256xbf16>,
    return
  }
  func.func @transform_0(%arg0: i32) -> (i32, i32) {
    %c0_i32 = arith.constant 0 : i32
    %c0_i32_0 = arith.constant 0 : i32
    %c0_i32_1 = arith.constant 0 : i32
    return %c0_i32, %c0_i32_0 : i32, i32
  }
  func.func @transform_1(%arg0: i32) -> (i32, i32) {
    %c0_i32 = arith.constant 0 : i32
    %c0_i32_0 = arith.constant 0 : i32
    return %c0_i32, %arg0 : i32, i32
  }
  func.func @transform_2(%arg0: i32) -> (i32, i32) {
    %c0_i32 = arith.constant 0 : i32
    %c0_i32_0 = arith.constant 0 : i32
    return %c0_i32, %arg0 : i32, i32
  }
  func.func @transform_3(%arg0: i32) -> (i32, i32) {
    %c0_i32 = arith.constant 0 : i32
    %c0_i32_0 = arith.constant 0 : i32
    return %c0_i32, %arg0 : i32, i32
  }
  func.func @transform_4(%arg0: i32) -> (i32, i32) {
    %c0_i32 = arith.constant 0 : i32
    %c0_i32_0 = arith.constant 0 : i32
    return %c0_i32, %arg0 : i32, i32
  }
}

</mosaic_0001>

<llo_original>
// kernel: tpu_custom_call.1
$region0: #{tpu_custom_call.1}
  #allocation0 [shape = 'u32[]', space=smem, size = 0x4, offset = 0x4, fixed_abs, tag = 'smem constant byte address 0x4 - core index']
  #allocation1 [shape = 'u32[72,128]{1,0:T(1,128)}', space=vmem, size = 0x9000, scoped, tag = 'internal scratch']
  %s0 = inlined_call_operand.hbm [shape: bf16[256,256], index: 0, kind: input, shape index: {}]
  %s1 = inlined_call_operand.hbm [shape: bf16[256,512], index: 1, kind: input, shape index: {}]
  %s2 = inlined_call_operand.hbm [shape: f32[1,512], index: 2, kind: input, shape index: {}]
  %s3 = inlined_call_operand.hbm [shape: f32[1,512], index: 3, kind: input, shape index: {}]
  %s4 = inlined_call_operand.hbm [shape: bf16[256,512], index: 4, kind: output, shape index: {}]
  %s5 = sld [smem:[#allocation0]]
  $region65: #{tpu_custom_call.1} parent=0
    _
  %s7 = ssub.s32 1, %s5
  %s8 = scalar_select 0, %s7, %s5
  $region1: #{tpu_custom_call.1} parent=0
    #allocation2 [shape = 'u8[131072]{0}', space=vmem, size = 0x20000, scoped, tag = 'input window, operand 0, single buffered']
    #allocation3 [shape = 's32[2]{0}', space=sflag, size = 0x8, scoped, tag = 'scoped memory for tpu_custom_call.1']
    #allocation4 [shape = 's32[2]{0}', space=sflag, size = 0x8, scoped, tag = 'scoped memory for tpu_custom_call.1']
    #allocation5 [shape = 'u8[262144]{0}', space=vmem, size = 0x40000, scoped, tag = 'input window, operand 1']
    #allocation6 [shape = 's32[2]{0}', space=sflag, size = 0x8, scoped, tag = 'scoped memory for tpu_custom_call.1']
    #allocation7 [shape = 'u8[2048]{0}', space=vmem, size = 0x800, scoped, tag = 'input window, operand 2']
    #allocation8 [shape = 'u8[2048]{0}', space=vmem, size = 0x800, scoped, tag = 'input window, operand 3']
    #allocation9 [shape = 's32[2]{0}', space=sflag, size = 0x8, scoped, tag = 'scoped memory for tpu_custom_call.1']
    #allocation10 [shape = 'u8[262144]{0}', space=vmem, size = 0x40000, scoped, tag = 'output window, operand 0']
    %9 = vsyncpa [#allocation3], 0
    %10 = vsyncpa [#allocation6], 0
    %s11 = scalar_lea.sflag [#allocation6], 1
    %12 = vsyncpa %s11, 0
    %13 = vsyncpa [#allocation9], 0
    %s14 = scalar_lea.sflag [#allocation9], 1
    %15 = vsyncpa %s14, 0
    %16 = vsyncpa [#allocation4], 0
    %s17 = scalar_lea.sflag [#allocation4], 1
    %18 = vsyncpa %s17, 0
    loop: start=0, step=1, limit=4
    $region2: #{tpu_custom_call.1} parent=1 // loop_pre_header
      _
    $region3: #{tpu_custom_call.1} parent=1 // loop_header
      %s20 = sphi 0, %s24
      %p21 = scmp.ge.s32.totalorder %s20, 4
      %s28 = sphi 0, %s28
      %s30 = sphi 0, %s28
      %s31 = sphi 0, %s30
      %s45 = sphi 0, %s31
      %s51 = sphi 0, %s53
      %s54 = sphi 0, %s51
      %s55 = sphi 0, %s54
      %s71 = sphi 0, %s55
      %s77 = sphi 0, %s79
      %s80 = sphi 0, %s77
      %s81 = sphi 0, %s80
      %s97 = sphi 0, %s81
      %s103 = sphi 0, %s105
      %s106 = sphi 0, %s103
      %s107 = sphi 0, %s106
      %s123 = sphi 0, %s107
      %s129 = sphi 0, %s131
      %s132 = sphi 0, %s129
      %s133 = sphi 0, %s132
      %s149 = sphi 0, %s133
    $region4: #{tpu_custom_call.1} parent=1 // loop_header_branch
      %23 = sbr.rel (%p21) target = $region8
    $region5: #{tpu_custom_call.1} parent=1 // loop_body
      %s25 = ssub.s32 %s20, 1
      %s26 = ssub.s32 %s20, 2
      %s27 = sadd.s32 %s20, 1
      %s29 = sadd.s32 %s28, 1
      %p32 = scmp.eq.s32.totalorder %s20, 1
      %p33 = scmp.ne.s32.totalorder %s28, %s30
      %p34 = scmp.eq.s32.totalorder %s20, 0
      %p35 = por %p33, %p34
      %p36 = scmp.ne.s32.totalorder %s28, %s30
      %p37 = scmp.eq.s32.totalorder %s25, 1
      %p38 = por %p36, %p37
      %p39 = scmp.ne.s32.totalorder %s30, %s31
      %p40 = scmp.eq.s32.totalorder %s25, 0
      %p41 = por %p39, %p40
      %p42 = scmp.ne.s32.totalorder %s30, %s31
      %p43 = scmp.eq.s32.totalorder %s26, 1
      %p44 = por %p42, %p43
      %p46 = scmp.ne.s32.totalorder %s31, %s45
      %p47 = scmp.eq.s32.totalorder %s26, 0
      %p48 = por %p46, %p47
      %s49 = ssub.s32 %s20, %s27
      %p50 = scmp.eq.s32.totalorder %s49, 0
      %s52 = sadd.s32 %s51, 1
      %s53 = scalar_select %p50, %s51, %s52
      %p56 = pneg %p50
      %p57 = scmp.eq.s32.totalorder %s20, 1
      %p58 = por %p56, %p57
      %p59 = scmp.ne.s32.totalorder %s51, %s54
      %p60 = scmp.eq.s32.totalorder %s20, 0
      %p61 = por %p59, %p60
      %p62 = scmp.ne.s32.totalorder %s51, %s54
      %p63 = scmp.eq.s32.totalorder %s25, 1
      %p64 = por %p62, %p63
      %p65 = scmp.ne.s32.totalorder %s54, %s55
      %p66 = scmp.eq.s32.totalorder %s25, 0
      %p67 = por %p65, %p66
      %p68 = scmp.ne.s32.totalorder %s54, %s55
      %p69 = scmp.eq.s32.totalorder %s26, 1
      %p70 = por %p68, %p69
      %p72 = scmp.ne.s32.totalorder %s55, %s71
      %p73 = scmp.eq.s32.totalorder %s26, 0
      %p74 = por %p72, %p73
      %s75 = ssub.s32 %s20, %s27
      %p76 = scmp.eq.s32.totalorder %s75, 0
      %s78 = sadd.s32 %s77, 1
      %s79 = scalar_select %p76, %s77, %s78
      %p82 = pneg %p76
      %p83 = scmp.eq.s32.totalorder %s20, 1
      %p84 = por %p82, %p83
      %p85 = scmp.ne.s32.totalorder %s77, %s80
      %p86 = scmp.eq.s32.totalorder %s20, 0
      %p87 = por %p85, %p86
      %p88 = scmp.ne.s32.totalorder %s77, %s80
      %p89 = scmp.eq.s32.totalorder %s25, 1
      %p90 = por %p88, %p89
      %p91 = scmp.ne.s32.totalorder %s80, %s81
      %p92 = scmp.eq.s32.totalorder %s25, 0
      %p93 = por %p91, %p92
      %p94 = scmp.ne.s32.totalorder %s80, %s81
      %p95 = scmp.eq.s32.totalorder %s26, 1
      %p96 = por %p94, %p95
      %p98 = scmp.ne.s32.totalorder %s81, %s97
      %p99 = scmp.eq.s32.totalorder %s26, 0
      %p100 = por %p98, %p99
      %s101 = ssub.s32 %s20, %s27
      %p102 = scmp.eq.s32.totalorder %s101, 0
      %s104 = sadd.s32 %s103, 1
      %s105 = scalar_select %p102, %s103, %s104
      %p108 = pneg %p102
      %p109 = scmp.eq.s32.totalorder %s20, 1
      %p110 = por %p108, %p109
      %p111 = scmp.ne.s32.totalorder %s103, %s106
      %p112 = scmp.eq.s32.totalorder %s20, 0
      %p113 = por %p111, %p112
      %p114 = scmp.ne.s32.totalorder %s103, %s106
      %p115 = scmp.eq.s32.totalorder %s25, 1
      %p116 = por %p114, %p115
      %p117 = scmp.ne.s32.totalorder %s106, %s107
      %p118 = scmp.eq.s32.totalorder %s25, 0
      %p119 = por %p117, %p118
      %p120 = scmp.ne.s32.totalorder %s106, %s107
      %p121 = scmp.eq.s32.totalorder %s26, 1
      %p122 = por %p120, %p121
      %p124 = scmp.ne.s32.totalorder %s107, %s123
      %p125 = scmp.eq.s32.totalorder %s26, 0
      %p126 = por %p124, %p125
      %s127 = ssub.s32 %s20, %s27
      %p128 = scmp.eq.s32.totalorder %s127, 0
      %s130 = sadd.s32 %s129, 1
      %s131 = scalar_select %p128, %s129, %s130
      %p134 = pneg %p128
      %p135 = scmp.eq.s32.totalorder %s20, 1
      %p136 = por %p134, %p135
      %p137 = scmp.ne.s32.totalorder %s129, %s132
      %p138 = scmp.eq.s32.totalorder %s20, 0
      %p139 = por %p137, %p138
      %p140 = scmp.ne.s32.totalorder %s129, %s132
      %p141 = scmp.eq.s32.totalorder %s25, 1
      %p142 = por %p140, %p141
      %p143 = scmp.ne.s32.totalorder %s132, %s133
      %p144 = scmp.eq.s32.totalorder %s25, 0
      %p145 = por %p143, %p144
      %p146 = scmp.ne.s32.totalorder %s132, %s133
      %p147 = scmp.eq.s32.totalorder %s26, 1
      %p148 = por %p146, %p147
      %p150 = scmp.ne.s32.totalorder %s133, %s149
      %p151 = scmp.eq.s32.totalorder %s26, 0
      %p152 = por %p150, %p151
      %p153 = scmp.le.s32.totalorder 1, %s20
      %p154 = scmp.lt.s32.totalorder %s20, 3
      %p155 = pnand %p153, %p154
      %p156 = pneg %p155
      // Predicated region
      $region9: #{tpu_custom_call.1} parent=5 // pred_check
        _
      $region10: #{tpu_custom_call.1} parent=5 // pred_check_branch
        %158 = sbr.rel (%p155) target = $region12
      $region11: #{tpu_custom_call.1} parent=5 // pred_region
        %s159 = ssub.s32 %s20, 1
        // Predicated region
        $region13: #{tpu_custom_call.1} parent=11 // pred_check
          %p160 = pneg %p41
        $region14: #{tpu_custom_call.1} parent=11 // pred_check_branch
          %162 = sbr.rel (%p160) target = $region16
        $region15: #{tpu_custom_call.1} parent=11 // pred_region
          %164 = vsyncadd [#allocation3], 0
          %s165 = sshll.u32 %s0, 4
          %s166 = int_to_ptr.hbm [resolvable:$true] %s165
          %s167 = sshll.u32 [#allocation2], 4
          %s168 = int_to_ptr.vmem [resolvable:$true] %s167
          %173 = dma.hbm_to_vmem [thread:$0]  %s166, 4096, %s168, [#allocation3], 128, 128, 8
        $region16: #{tpu_custom_call.1} parent=11 // pred_fallthru
          _
      $region12: #{tpu_custom_call.1} parent=5 // pred_fallthru
        _
      %p174 = scmp.lt.s32.totalorder %s20, 2
      // Predicated region
      $region17: #{tpu_custom_call.1} parent=5 // pred_check
        %p175 = pneg %p174
      $region18: #{tpu_custom_call.1} parent=5 // pred_check_branch
        %177 = sbr.rel (%p175) target = $region20
      $region19: #{tpu_custom_call.1} parent=5 // pred_region
        // Predicated region
        $region21: #{tpu_custom_call.1} parent=19 // pred_check
          %p178 = pneg %p61
        $region22: #{tpu_custom_call.1} parent=19 // pred_check_branch
          %180 = sbr.rel (%p178) target = $region24
        $region23: #{tpu_custom_call.1} parent=19 // pred_region
          %s181 = sand.u32 %s20, 1
          %s182 = scalar_lea.sflag [#allocation6], %s181
          %s183 = sand.u32 %s51, 1
          %s184 = smul.addr %s183, 256
          %s185 = scalar_lea.vmem [#allocation5], %s184
          %s186 = smul.u32 2, %s20
          %188 = vsyncadd %s182, 0
          %s189 = smul.addr %s186, 4
          %s190 = scalar_lea.hbm %s1, %s189
          %s191 = sshll.u32 %s190, 4
          %s192 = int_to_ptr.hbm [resolvable:$true] %s191
          %s193 = sshll.u32 %s185, 4
          %s194 = int_to_ptr.vmem [resolvable:$true] %s193
          %199 = dma.hbm_to_vmem [thread:$0]  %s192, 4096, %s194, %s182, 256, 128, 8
        $region24: #{tpu_custom_call.1} parent=19 // pred_fallthru
          _
        // Predicated region
        $region25: #{tpu_custom_call.1} parent=19 // pred_check
          %p200 = pneg %p87
        $region26: #{tpu_custom_call.1} parent=19 // pred_check_branch
          %202 = sbr.rel (%p200) target = $region28
        $region27: #{tpu_custom_call.1} parent=19 // pred_region
          %s203 = sand.u32 %s20, 1
          %s204 = scalar_lea.sflag [#allocation6], %s203
          %s205 = sand.u32 %s77, 1
          %s206 = smul.addr %s205, 2
          %s207 = scalar_lea.vmem [#allocation7], %s206
          %s208 = smul.u32 2, %s20
          %210 = vsyncadd %s204, 0
          %s211 = scalar_lea.hbm %s2, %s208
          %s213 = sshll.u32 %s211, 4
          %s214 = int_to_ptr.hbm [resolvable:$true] %s213
          %s215 = sshll.u32 %s207, 4
          %s216 = int_to_ptr.vmem [resolvable:$true] %s215
          %218 = dma.hbm_to_vmem [thread:$0]  %s214, 32, %s216, %s204
        $region28: #{tpu_custom_call.1} parent=19 // pred_fallthru
          _
        // Predicated region
        $region29: #{tpu_custom_call.1} parent=19 // pred_check
          %p219 = pneg %p113
        $region30: #{tpu_custom_call.1} parent=19 // pred_check_branch
          %221 = sbr.rel (%p219) target = $region32
        $region31: #{tpu_custom_call.1} parent=19 // pred_region
          %s222 = sand.u32 %s103, 1
          %s223 = scalar_lea.sflag [#allocation9], %s222
          %s224 = sand.u32 %s103, 1
          %s225 = smul.addr %s224, 2
          %s226 = scalar_lea.vmem [#allocation8], %s225
          %s227 = smul.u32 2, %s20
          %229 = vsyncadd %s223, 0
          %s230 = scalar_lea.hbm %s3, %s227
          %s232 = sshll.u32 %s230, 4
          %s233 = int_to_ptr.hbm [resolvable:$true] %s232
          %s234 = sshll.u32 %s226, 4
          %s235 = int_to_ptr.vmem [resolvable:$true] %s234
          %237 = dma.hbm_to_vmem [thread:$0]  %s233, 32, %s235, %s223
        $region32: #{tpu_custom_call.1} parent=19 // pred_fallthru
          _
      $region20: #{tpu_custom_call.1} parent=5 // pred_fallthru
        _
      %p238 = scmp.le.s32.totalorder 1, %s20
      %p239 = scmp.lt.s32.totalorder %s20, 3
      %p240 = pnand %p238, %p239
      %p241 = pneg %p240
      // Predicated region
      $region33: #{tpu_custom_call.1} parent=5 // pred_check
        _
      $region34: #{tpu_custom_call.1} parent=5 // pred_check_branch
        %243 = sbr.rel (%p240) target = $region36
      $region35: #{tpu_custom_call.1} parent=5 // pred_region
        %s244 = ssub.s32 %s20, 1
        // Predicated region
        $region37: #{tpu_custom_call.1} parent=35 // pred_check
          %p245 = pneg %p41
        $region38: #{tpu_custom_call.1} parent=35 // pred_check_branch
          %247 = sbr.rel (%p245) target = $region40
        $region39: #{tpu_custom_call.1} parent=35 // pred_region
          %249 = dma.done [#allocation3], 4096
        $region40: #{tpu_custom_call.1} parent=35 // pred_fallthru
          _
        %s250 = sand.u32 %s25, 1
        %s251 = scalar_lea.sflag [#allocation6], %s250
        %s252 = sand.u32 %s54, 1
        %s253 = smul.addr %s252, 256
        %s254 = scalar_lea.vmem [#allocation5], %s253
        // Predicated region
        $region41: #{tpu_custom_call.1} parent=35 // pred_check
          %p255 = pneg %p67
        $region42: #{tpu_custom_call.1} parent=35 // pred_check_branch
          %257 = sbr.rel (%p255) target = $region44
        $region43: #{tpu_custom_call.1} parent=35 // pred_region
          %259 = dma.done %s251, 4096
        $region44: #{tpu_custom_call.1} parent=35 // pred_fallthru
          _
        %s260 = sand.u32 %s25, 1
        %s261 = scalar_lea.sflag [#allocation6], %s260
        %s262 = sand.u32 %s80, 1
        %s263 = smul.addr %s262, 2
        %s264 = scalar_lea.vmem [#allocation7], %s263
        // Predicated region
        $region45: #{tpu_custom_call.1} parent=35 // pred_check
          %p265 = pneg %p93
        $region46: #{tpu_custom_call.1} parent=35 // pred_check_branch
          %267 = sbr.rel (%p265) target = $region48
        $region47: #{tpu_custom_call.1} parent=35 // pred_region
          %269 = dma.done %s261, 32
        $region48: #{tpu_custom_call.1} parent=35 // pred_fallthru
          _
        %s270 = sand.u32 %s106, 1
        %s271 = scalar_lea.sflag [#allocation9], %s270
        %s272 = sand.u32 %s106, 1
        %s273 = smul.addr %s272, 2
        %s274 = scalar_lea.vmem [#allocation8], %s273
        // Predicated region
        $region49: #{tpu_custom_call.1} parent=35 // pred_check
          %p275 = pneg %p119
        $region50: #{tpu_custom_call.1} parent=35 // pred_check_branch
          %277 = sbr.rel (%p275) target = $region52
        $region51: #{tpu_custom_call.1} parent=35 // pred_region
          %279 = dma.done %s271, 32
        $region52: #{tpu_custom_call.1} parent=35 // pred_fallthru
          _
        %p280 = pneg %p41
        %p281 = pneg %p38
        %s282 = sand.u32 %s25, 1
        %s283 = scalar_lea.sflag [#allocation6], %s282
        %s284 = sand.u32 %s54, 1
        %s285 = smul.addr %s284, 256
        %s286 = scalar_lea.vmem [#allocation5], %s285
        %p287 = pneg %p67
        %p288 = pneg %p64
        %s289 = sand.u32 %s25, 1
        %s290 = scalar_lea.sflag [#allocation6], %s289
        %s291 = sand.u32 %s80, 1
        %s292 = smul.addr %s291, 2
        %s293 = scalar_lea.vmem [#allocation7], %s292
        %p294 = pneg %p93
        %p295 = pneg %p90
        %s296 = sand.u32 %s106, 1
        %s297 = scalar_lea.sflag [#allocation9], %s296
        %s298 = sand.u32 %s106, 1
        %s299 = smul.addr %s298, 2
        %s300 = scalar_lea.vmem [#allocation8], %s299
        %p301 = pneg %p119
        %p302 = pneg %p116
        %p303 = pneg %p145
        %p304 = pneg %p142
        %s305 = sand.u32 %s132, 1
        %s306 = scalar_lea.sflag [#allocation4], %s305
        %s307 = sand.u32 %s132, 1
        %s308 = smul.addr %s307, 256
        %s309 = scalar_lea.vmem [#allocation10], %s308
        %s310 = smul.u32 2, %s25
        %s311 = smul.u32 2, %s25
        %s312 = smul.u32 2, %s25
        %s313 = smul.u32 2, %s25
        %v314 = vld [vmem:[#allocation2] sm:$0xff]
        %v315 = vld [vmem:[#allocation2 + $0x8] sm:$0xff]
        %v316 = vld [vmem:[#allocation2 + $0x10] sm:$0xff]
        %v317 = vld [vmem:[#allocation2 + $0x18] sm:$0xff]
        %v318 = vld [vmem:[#allocation2 + $0x20] sm:$0xff]
        %v319 = vld [vmem:[#allocation2 + $0x28] sm:$0xff]
        %v320 = vld [vmem:[#allocation2 + $0x30] sm:$0xff]
        %v321 = vld [vmem:[#allocation2 + $0x38] sm:$0xff]
        %v322 = vld [vmem:[#allocation2 + $0x40] sm:$0xff]
        %v323 = vld [vmem:[#allocation2 + $0x48] sm:$0xff]
        %v324 = vld [vmem:[#allocation2 + $0x50] sm:$0xff]
        %v325 = vld [vmem:[#allocation2 + $0x58] sm:$0xff]
        %v326 = vld [vmem:[#allocation2 + $0x60] sm:$0xff]
        %v327 = vld [vmem:[#allocation2 + $0x68] sm:$0xff]
        %v328 = vld [vmem:[#allocation2 + $0x70] sm:$0xff]
        %v329 = vld [vmem:[#allocation2 + $0x78] sm:$0xff]
        %v330 = vld [vmem:[#allocation2 + $0x80] sm:$0xff]
        %v331 = vld [vmem:[#allocation2 + $0x88] sm:$0xff]
        %v332 = vld [vmem:[#allocation2 + $0x90] sm:$0xff]
        %v333 = vld [vmem:[#allocation2 + $0x98] sm:$0xff]
        %v334 = vld [vmem:[#allocation2 + $0xa0] sm:$0xff]
        %v335 = vld [vmem:[#allocation2 + $0xa8] sm:$0xff]
        %v336 = vld [vmem:[#allocation2 + $0xb0] sm:$0xff]
        %v337 = vld [vmem:[#allocation2 + $0xb8] sm:$0xff]
        %v338 = vld [vmem:[#allocation2 + $0xc0] sm:$0xff]
        %v339 = vld [vmem:[#allocation2 + $0xc8] sm:$0xff]
        %v340 = vld [vmem:[#allocation2 + $0xd0] sm:$0xff]
        %v341 = vld [vmem:[#allocation2 + $0xd8] sm:$0xff]
        %v342 = vld [vmem:[#allocation2 + $0xe0] sm:$0xff]
        %v343 = vld [vmem:[#allocation2 + $0xe8] sm:$0xff]
        %v344 = vld [vmem:[#allocation2 + $0xf0] sm:$0xff]
        %v345 = vld [vmem:[#allocation2 + $0xf8] sm:$0xff]
        %v346 = vld [vmem:[%s254] sm:$0xff]
        %v347 = vld [vmem:[%s254 + $0x8] sm:$0xff]
        %v348 = vld [vmem:[%s254 + $0x10] sm:$0xff]
        %v349 = vld [vmem:[%s254 + $0x18] sm:$0xff]
        %v350 = vld [vmem:[%s254 + $0x20] sm:$0xff]
        %v351 = vld [vmem:[%s254 + $0x28] sm:$0xff]
        %v352 = vld [vmem:[%s254 + $0x30] sm:$0xff]
        %v353 = vld [vmem:[%s254 + $0x38] sm:$0xff]
        %v354 = vld [vmem:[%s254 + $0x40] sm:$0xff]
        %v355 = vld [vmem:[%s254 + $0x48] sm:$0xff]
        %v356 = vld [vmem:[%s254 + $0x50] sm:$0xff]
        %v357 = vld [vmem:[%s254 + $0x58] sm:$0xff]
        %v358 = vld [vmem:[%s254 + $0x60] sm:$0xff]
        %v359 = vld [vmem:[%s254 + $0x68] sm:$0xff]
        %v360 = vld [vmem:[%s254 + $0x70] sm:$0xff]
        %v361 = vld [vmem:[%s254 + $0x78] sm:$0xff]
        %v362 = vld [vmem:[%s254 + $0x80] sm:$0xff]
        %v363 = vld [vmem:[%s254 + $0x88] sm:$0xff]
        %v364 = vld [vmem:[%s254 + $0x90] sm:$0xff]
        %v365 = vld [vmem:[%s254 + $0x98] sm:$0xff]
        %v366 = vld [vmem:[%s254 + $0xa0] sm:$0xff]
        %v367 = vld [vmem:[%s254 + $0xa8] sm:$0xff]
        %v368 = vld [vmem:[%s254 + $0xb0] sm:$0xff]
        %v369 = vld [vmem:[%s254 + $0xb8] sm:$0xff]
        %v370 = vld [vmem:[%s254 + $0xc0] sm:$0xff]
        %v371 = vld [vmem:[%s254 + $0xc8] sm:$0xff]
        %v372 = vld [vmem:[%s254 + $0xd0] sm:$0xff]
        %v373 = vld [vmem:[%s254 + $0xd8] sm:$0xff]
        %v374 = vld [vmem:[%s254 + $0xe0] sm:$0xff]
        %v375 = vld [vmem:[%s254 + $0xe8] sm:$0xff]
        %v376 = vld [vmem:[%s254 + $0xf0] sm:$0xff]
        %v377 = vld [vmem:[%s254 + $0xf8] sm:$0xff]
        %v410 = vunpack.c.l.b16 %v314
        %v411 = vunpack.c.h.b16 %v314
        %v412 = vunpack.c.l.b16 %v315
        %v413 = vunpack.c.h.b16 %v315
        %v414 = vunpack.c.l.b16 %v316
        %v415 = vunpack.c.h.b16 %v316
        %v416 = vunpack.c.l.b16 %v317
        %v417 = vunpack.c.h.b16 %v317
        %v418 = vunpack.c.l.b16 %v318
        %v419 = vunpack.c.h.b16 %v318
        %v420 = vunpack.c.l.b16 %v319
        %v421 = vunpack.c.h.b16 %v319
        %v422 = vunpack.c.l.b16 %v320
        %v423 = vunpack.c.h.b16 %v320
        %v424 = vunpack.c.l.b16 %v321
        %v425 = vunpack.c.h.b16 %v321
        %v426 = vunpack.c.l.b16 %v322
        %v427 = vunpack.c.h.b16 %v322
        %v428 = vunpack.c.l.b16 %v323
        %v429 = vunpack.c.h.b16 %v323
        %v430 = vunpack.c.l.b16 %v324
        %v431 = vunpack.c.h.b16 %v324
        %v432 = vunpack.c.l.b16 %v325
        %v433 = vunpack.c.h.b16 %v325
        %v434 = vunpack.c.l.b16 %v326
        %v435 = vunpack.c.h.b16 %v326
        %v436 = vunpack.c.l.b16 %v327
        %v437 = vunpack.c.h.b16 %v327
        %v438 = vunpack.c.l.b16 %v328
        %v439 = vunpack.c.h.b16 %v328
        %v440 = vunpack.c.l.b16 %v329
        %v441 = vunpack.c.h.b16 %v329
        %v442 = vunpack.c.l.b16 %v330
        %v443 = vunpack.c.h.b16 %v330
        %v444 = vunpack.c.l.b16 %v331
        %v445 = vunpack.c.h.b16 %v331
        %v446 = vunpack.c.l.b16 %v332
        %v447 = vunpack.c.h.b16 %v332
        %v448 = vunpack.c.l.b16 %v333
        %v449 = vunpack.c.h.b16 %v333
        %v450 = vunpack.c.l.b16 %v334
        %v451 = vunpack.c.h.b16 %v334
        %v452 = vunpack.c.l.b16 %v335
        %v453 = vunpack.c.h.b16 %v335
        %v454 = vunpack.c.l.b16 %v336
        %v455 = vunpack.c.h.b16 %v336
        %v456 = vunpack.c.l.b16 %v337
        %v457 = vunpack.c.h.b16 %v337
        %v458 = vunpack.c.l.b16 %v338
        %v459 = vunpack.c.h.b16 %v338
        %v460 = vunpack.c.l.b16 %v339
        %v461 = vunpack.c.h.b16 %v339
        %v462 = vunpack.c.l.b16 %v340
        %v463 = vunpack.c.h.b16 %v340
        %v464 = vunpack.c.l.b16 %v341
        %v465 = vunpack.c.h.b16 %v341
        %v466 = vunpack.c.l.b16 %v342
        %v467 = vunpack.c.h.b16 %v342
        %v468 = vunpack.c.l.b16 %v343
        %v469 = vunpack.c.h.b16 %v343
        %v470 = vunpack.c.l.b16 %v344
        %v471 = vunpack.c.h.b16 %v344
        %v472 = vunpack.c.l.b16 %v345
        %v473 = vunpack.c.h.b16 %v345
        %v474 = vpack.c.b16 %v412, %v410
        %v475 = vpack.c.b16 %v413, %v411
        %v476 = vpack.c.b16 %v416, %v414
        %v477 = vpack.c.b16 %v417, %v415
        %v478 = vpack.c.b16 %v420, %v418
        %v479 = vpack.c.b16 %v421, %v419
        %v480 = vpack.c.b16 %v424, %v422
        %v481 = vpack.c.b16 %v425, %v423
        %v482 = vpack.c.b16 %v428, %v426
        %v483 = vpack.c.b16 %v429, %v427
        %v484 = vpack.c.b16 %v432, %v430
        %v485 = vpack.c.b16 %v433, %v431
        %v486 = vpack.c.b16 %v436, %v434
        %v487 = vpack.c.b16 %v437, %v435
        %v488 = vpack.c.b16 %v440, %v438
        %v489 = vpack.c.b16 %v441, %v439
        %v490 = vpack.c.b16 %v444, %v442
        %v491 = vpack.c.b16 %v445, %v443
        %v492 = vpack.c.b16 %v448, %v446
        %v493 = vpack.c.b16 %v449, %v447
        %v494 = vpack.c.b16 %v452, %v450
        %v495 = vpack.c.b16 %v453, %v451
        %v496 = vpack.c.b16 %v456, %v454
        %v497 = vpack.c.b16 %v457, %v455
        %v498 = vpack.c.b16 %v460, %v458
        %v499 = vpack.c.b16 %v461, %v459
        %v500 = vpack.c.b16 %v464, %v462
        %v501 = vpack.c.b16 %v465, %v463
        %v502 = vpack.c.b16 %v468, %v466
        %v503 = vpack.c.b16 %v469, %v467
        %v504 = vpack.c.b16 %v472, %v470
        %v505 = vpack.c.b16 %v473, %v471
        %v570 = vunpack.c.l.b16 %v346
        %v571 = vunpack.c.h.b16 %v346
        %v572 = vunpack.c.l.b16 %v347
        %v573 = vunpack.c.h.b16 %v347
        %v574 = vunpack.c.l.b16 %v348
        %v575 = vunpack.c.h.b16 %v348
        %v576 = vunpack.c.l.b16 %v349
        %v577 = vunpack.c.h.b16 %v349
        %v578 = vunpack.c.l.b16 %v350
        %v579 = vunpack.c.h.b16 %v350
        %v580 = vunpack.c.l.b16 %v351
        %v581 = vunpack.c.h.b16 %v351
        %v582 = vunpack.c.l.b16 %v352
        %v583 = vunpack.c.h.b16 %v352
        %v584 = vunpack.c.l.b16 %v353
        %v585 = vunpack.c.h.b16 %v353
        %v586 = vunpack.c.l.b16 %v354
        %v587 = vunpack.c.h.b16 %v354
        %v588 = vunpack.c.l.b16 %v355
        %v589 = vunpack.c.h.b16 %v355
        %v590 = vunpack.c.l.b16 %v356
        %v591 = vunpack.c.h.b16 %v356
        %v592 = vunpack.c.l.b16 %v357
        %v593 = vunpack.c.h.b16 %v357
        %v594 = vunpack.c.l.b16 %v358
        %v595 = vunpack.c.h.b16 %v358
        %v596 = vunpack.c.l.b16 %v359
        %v597 = vunpack.c.h.b16 %v359
        %v598 = vunpack.c.l.b16 %v360
        %v599 = vunpack.c.h.b16 %v360
        %v600 = vunpack.c.l.b16 %v361
        %v601 = vunpack.c.h.b16 %v361
        %v602 = vunpack.c.l.b16 %v362
        %v603 = vunpack.c.h.b16 %v362
        %v604 = vunpack.c.l.b16 %v363
        %v605 = vunpack.c.h.b16 %v363
        %v606 = vunpack.c.l.b16 %v364
        %v607 = vunpack.c.h.b16 %v364
        %v608 = vunpack.c.l.b16 %v365
        %v609 = vunpack.c.h.b16 %v365
        %v610 = vunpack.c.l.b16 %v366
        %v611 = vunpack.c.h.b16 %v366
        %v612 = vunpack.c.l.b16 %v367
        %v613 = vunpack.c.h.b16 %v367
        %v614 = vunpack.c.l.b16 %v368
        %v615 = vunpack.c.h.b16 %v368
        %v616 = vunpack.c.l.b16 %v369
        %v617 = vunpack.c.h.b16 %v369
        %v618 = vunpack.c.l.b16 %v370
        %v619 = vunpack.c.h.b16 %v370
        %v620 = vunpack.c.l.b16 %v371
        %v621 = vunpack.c.h.b16 %v371
        %v622 = vunpack.c.l.b16 %v372
        %v623 = vunpack.c.h.b16 %v372
        %v624 = vunpack.c.l.b16 %v373
        %v625 = vunpack.c.h.b16 %v373
        %v626 = vunpack.c.l.b16 %v374
        %v627 = vunpack.c.h.b16 %v374
        %v628 = vunpack.c.l.b16 %v375
        %v629 = vunpack.c.h.b16 %v375
        %v630 = vunpack.c.l.b16 %v376
        %v631 = vunpack.c.h.b16 %v376
        %v632 = vunpack.c.l.b16 %v377
        %v633 = vunpack.c.h.b16 %v377
        %v634 = vpack.c.b16 %v572, %v570
        %v635 = vpack.c.b16 %v573, %v571
        %v636 = vpack.c.b16 %v576, %v574
        %v637 = vpack.c.b16 %v577, %v575
        %v638 = vpack.c.b16 %v580, %v578
        %v639 = vpack.c.b16 %v581, %v579
        %v640 = vpack.c.b16 %v584, %v582
        %v641 = vpack.c.b16 %v585, %v583
        %v642 = vpack.c.b16 %v588, %v586
        %v643 = vpack.c.b16 %v589, %v587
        %v644 = vpack.c.b16 %v592, %v590
        %v645 = vpack.c.b16 %v593, %v591
        %v646 = vpack.c.b16 %v596, %v594
        %v647 = vpack.c.b16 %v597, %v595
        %v648 = vpack.c.b16 %v600, %v598
        %v649 = vpack.c.b16 %v601, %v599
        %v650 = vpack.c.b16 %v604, %v602
        %v651 = vpack.c.b16 %v605, %v603
        %v652 = vpack.c.b16 %v608, %v606
        %v653 = vpack.c.b16 %v609, %v607
        %v654 = vpack.c.b16 %v612, %v610
        %v655 = vpack.c.b16 %v613, %v611
        %v656 = vpack.c.b16 %v616, %v614
        %v657 = vpack.c.b16 %v617, %v615
        %v658 = vpack.c.b16 %v620, %v618
        %v659 = vpack.c.b16 %v621, %v619
        %v660 = vpack.c.b16 %v624, %v622
        %v661 = vpack.c.b16 %v625, %v623
        %v662 = vpack.c.b16 %v628, %v626
        %v663 = vpack.c.b16 %v629, %v627
        %v664 = vpack.c.b16 %v632, %v630
        %v665 = vpack.c.b16 %v633, %v631
        %698 = vmatpush.bf16.msra.mxu0 %v648
        %699 = vmatpush.bf16.msra.mxu0 %v646
        %700 = vmatpush.bf16.msra.mxu0 %v644
        %701 = vmatpush.bf16.msra.mxu0 %v642
        %702 = vmatpush.bf16.msra.mxu0 %v640
        %703 = vmatpush.bf16.msra.mxu0 %v638
        %704 = vmatpush.bf16.msra.mxu0 %v636
        %705 = vmatpush.bf16.msra.mxu0 %v634
        %706 = vmatmul.bf16.gmra.mxu0 %v474
        %v707 = vpop.f32.mrf.mxu0
        %v708 = vadd.f32 0.0, %v707
        %v709 = vpop.f32.mrf.mxu0
        %v710 = vadd.f32 0.0, %v709
        %711 = vmatmul.bf16.gmra.mxu0 %v476
        %v712 = vpop.f32.mrf.mxu0
        %v713 = vadd.f32 0.0, %v712
        %v714 = vpop.f32.mrf.mxu0
        %v715 = vadd.f32 0.0, %v714
        %716 = vmatmul.bf16.gmra.mxu0 %v478
        %v717 = vpop.f32.mrf.mxu0
        %v718 = vadd.f32 0.0, %v717
        %v719 = vpop.f32.mrf.mxu0
        %v720 = vadd.f32 0.0, %v719
        %721 = vmatmul.bf16.gmra.mxu0 %v480
        %v722 = vpop.f32.mrf.mxu0
        %v723 = vadd.f32 0.0, %v722
        %v724 = vpop.f32.mrf.mxu0
        %v725 = vadd.f32 0.0, %v724
        %726 = vmatmul.bf16.gmra.mxu0 %v482
        %v727 = vpop.f32.mrf.mxu0
        %v728 = vadd.f32 0.0, %v727
        %v729 = vpop.f32.mrf.mxu0
        %v730 = vadd.f32 0.0, %v729
        %731 = vmatmul.bf16.gmra.mxu0 %v484
        %v732 = vpop.f32.mrf.mxu0
        %v733 = vadd.f32 0.0, %v732
        %v734 = vpop.f32.mrf.mxu0
        %v735 = vadd.f32 0.0, %v734
        %736 = vmatmul.bf16.gmra.mxu0 %v486
        %v737 = vpop.f32.mrf.mxu0
        %v738 = vadd.f32 0.0, %v737
        %v739 = vpop.f32.mrf.mxu0
        %v740 = vadd.f32 0.0, %v739
        %741 = vmatmul.bf16.gmra.mxu0 %v488
        %v742 = vpop.f32.mrf.mxu0
        %v743 = vadd.f32 0.0, %v742
        %v744 = vpop.f32.mrf.mxu0
        %v745 = vadd.f32 0.0, %v744
        %746 = vmatmul.bf16.gmra.mxu0 %v490
        %v747 = vpop.f32.mrf.mxu0
        %v748 = vadd.f32 0.0, %v747
        %v749 = vpop.f32.mrf.mxu0
        %v750 = vadd.f32 0.0, %v749
        %751 = vmatmul.bf16.gmra.mxu0 %v492
        %v752 = vpop.f32.mrf.mxu0
        %v753 = vadd.f32 0.0, %v752
        %v754 = vpop.f32.mrf.mxu0
        %v755 = vadd.f32 0.0, %v754
        %756 = vmatmul.bf16.gmra.mxu0 %v494
        %v757 = vpop.f32.mrf.mxu0
        %v758 = vadd.f32 0.0, %v757
        %v759 = vpop.f32.mrf.mxu0
        %v760 = vadd.f32 0.0, %v759
        %761 = vmatmul.bf16.gmra.mxu0 %v496
        %v762 = vpop.f32.mrf.mxu0
        %v763 = vadd.f32 0.0, %v762
        %v764 = vpop.f32.mrf.mxu0
        %v765 = vadd.f32 0.0, %v764
        %766 = vmatmul.bf16.gmra.mxu0 %v498
        %v767 = vpop.f32.mrf.mxu0
        %v768 = vadd.f32 0.0, %v767
        %v769 = vpop.f32.mrf.mxu0
        %v770 = vadd.f32 0.0, %v769
        %771 = vmatmul.bf16.gmra.mxu0 %v500
        %v772 = vpop.f32.mrf.mxu0
        %v773 = vadd.f32 0.0, %v772
        %v774 = vpop.f32.mrf.mxu0
        %v775 = vadd.f32 0.0, %v774
        %776 = vmatmul.bf16.gmra.mxu0 %v502
        %v777 = vpop.f32.mrf.mxu0
        %v778 = vadd.f32 0.0, %v777
        %v779 = vpop.f32.mrf.mxu0
        %v780 = vadd.f32 0.0, %v779
        %781 = vmatmul.bf16.gmra.mxu0 %v504
        %v782 = vpop.f32.mrf.mxu0
        %v783 = vadd.f32 0.0, %v782
        %v784 = vpop.f32.mrf.mxu0
        %v785 = vadd.f32 0.0, %v784
        %786 = vdwg.mxu0
        %787 = vmatpush.bf16.msra.mxu0 %v664
        %788 = vmatpush.bf16.msra.mxu0 %v662
        %789 = vmatpush.bf16.msra.mxu0 %v660
        %790 = vmatpush.bf16.msra.mxu0 %v658
        %791 = vmatpush.bf16.msra.mxu0 %v656
        %792 = vmatpush.bf16.msra.mxu0 %v654
        %793 = vmatpush.bf16.msra.mxu0 %v652
        %794 = vmatpush.bf16.msra.mxu0 %v650
        %795 = vmatmul.bf16.gmra.mxu0 %v475
        %v796 = vpop.f32.mrf.mxu0
        %v797 = vadd.f32 %v708, %v796
        %v798 = vpop.f32.mrf.mxu0
        %v799 = vadd.f32 %v710, %v798
        %800 = vmatmul.bf16.gmra.mxu0 %v477
        %v801 = vpop.f32.mrf.mxu0
        %v802 = vadd.f32 %v713, %v801
        %v803 = vpop.f32.mrf.mxu0
        %v804 = vadd.f32 %v715, %v803
        %805 = vmatmul.bf16.gmra.mxu0 %v479
        %v806 = vpop.f32.mrf.mxu0
        %v807 = vadd.f32 %v718, %v806
        %v808 = vpop.f32.mrf.mxu0
        %v809 = vadd.f32 %v720, %v808
        %810 = vmatmul.bf16.gmra.mxu0 %v481
        %v811 = vpop.f32.mrf.mxu0
        %v812 = vadd.f32 %v723, %v811
        %v813 = vpop.f32.mrf.mxu0
        %v814 = vadd.f32 %v725, %v813
        %815 = vmatmul.bf16.gmra.mxu0 %v483
        %v816 = vpop.f32.mrf.mxu0
        %v817 = vadd.f32 %v728, %v816
        %v818 = vpop.f32.mrf.mxu0
        %v819 = vadd.f32 %v730, %v818
        %820 = vmatmul.bf16.gmra.mxu0 %v485
        %v821 = vpop.f32.mrf.mxu0
        %v822 = vadd.f32 %v733, %v821
        %v823 = vpop.f32.mrf.mxu0
        %v824 = vadd.f32 %v735, %v823
        %825 = vmatmul.bf16.gmra.mxu0 %v487
        %v826 = vpop.f32.mrf.mxu0
        %v827 = vadd.f32 %v738, %v826
        %v828 = vpop.f32.mrf.mxu0
        %v829 = vadd.f32 %v740, %v828
        %830 = vmatmul.bf16.gmra.mxu0 %v489
        %v831 = vpop.f32.mrf.mxu0
        %v832 = vadd.f32 %v743, %v831
        %v833 = vpop.f32.mrf.mxu0
        %v834 = vadd.f32 %v745, %v833
        %835 = vmatmul.bf16.gmra.mxu0 %v491
        %v836 = vpop.f32.mrf.mxu0
        %v837 = vadd.f32 %v748, %v836
        %v838 = vpop.f32.mrf.mxu0
        %v839 = vadd.f32 %v750, %v838
        %840 = vmatmul.bf16.gmra.mxu0 %v493
        %v841 = vpop.f32.mrf.mxu0
        %v842 = vadd.f32 %v753, %v841
        %v843 = vpop.f32.mrf.mxu0
        %v844 = vadd.f32 %v755, %v843
        %845 = vmatmul.bf16.gmra.mxu0 %v495
        %v846 = vpop.f32.mrf.mxu0
        %v847 = vadd.f32 %v758, %v846
        %v848 = vpop.f32.mrf.mxu0
        %v849 = vadd.f32 %v760, %v848
        %850 = vmatmul.bf16.gmra.mxu0 %v497
        %v851 = vpop.f32.mrf.mxu0
        %v852 = vadd.f32 %v763, %v851
        %v853 = vpop.f32.mrf.mxu0
        %v854 = vadd.f32 %v765, %v853
        %855 = vmatmul.bf16.gmra.mxu0 %v499
        %v856 = vpop.f32.mrf.mxu0
        %v857 = vadd.f32 %v768, %v856
        %v858 = vpop.f32.mrf.mxu0
        %v859 = vadd.f32 %v770, %v858
        %860 = vmatmul.bf16.gmra.mxu0 %v501
        %v861 = vpop.f32.mrf.mxu0
        %v862 = vadd.f32 %v773, %v861
        %v863 = vpop.f32.mrf.mxu0
        %v864 = vadd.f32 %v775, %v863
        %865 = vmatmul.bf16.gmra.mxu0 %v503
        %v866 = vpop.f32.mrf.mxu0
        %v867 = vadd.f32 %v778, %v866
        %v868 = vpop.f32.mrf.mxu0
        %v869 = vadd.f32 %v780, %v868
        %870 = vmatmul.bf16.gmra.mxu0 %v505
        %v871 = vpop.f32.mrf.mxu0
        %v872 = vadd.f32 %v783, %v871
        %v873 = vpop.f32.mrf.mxu0
        %v874 = vadd.f32 %v785, %v873
        %875 = vdwg.mxu0
        %876 = vmatpush.bf16.msra.mxu0 %v649
        %877 = vmatpush.bf16.msra.mxu0 %v647
        %878 = vmatpush.bf16.msra.mxu0 %v645
        %879 = vmatpush.bf16.msra.mxu0 %v643
        %880 = vmatpush.bf16.msra.mxu0 %v641
        %881 = vmatpush.bf16.msra.mxu0 %v639
        %882 = vmatpush.bf16.msra.mxu0 %v637
        %883 = vmatpush.bf16.msra.mxu0 %v635
        %884 = vmatmul.bf16.gmra.mxu0 %v474
        %v885 = vpop.f32.mrf.mxu0
        %v886 = vadd.f32 0.0, %v885
        %v887 = vpop.f32.mrf.mxu0
        %v888 = vadd.f32 0.0, %v887
        %889 = vmatmul.bf16.gmra.mxu0 %v476
        %v890 = vpop.f32.mrf.mxu0
        %v891 = vadd.f32 0.0, %v890
        %v892 = vpop.f32.mrf.mxu0
        %v893 = vadd.f32 0.0, %v892
        %894 = vmatmul.bf16.gmra.mxu0 %v478
        %v895 = vpop.f32.mrf.mxu0
        %v896 = vadd.f32 0.0, %v895
        %v897 = vpop.f32.mrf.mxu0
        %v898 = vadd.f32 0.0, %v897
        %899 = vmatmul.bf16.gmra.mxu0 %v480
        %v900 = vpop.f32.mrf.mxu0
        %v901 = vadd.f32 0.0, %v900
        %v902 = vpop.f32.mrf.mxu0
        %v903 = vadd.f32 0.0, %v902
        %904 = vmatmul.bf16.gmra.mxu0 %v482
        %v905 = vpop.f32.mrf.mxu0
        %v906 = vadd.f32 0.0, %v905
        %v907 = vpop.f32.mrf.mxu0
        %v908 = vadd.f32 0.0, %v907
        %909 = vmatmul.bf16.gmra.mxu0 %v484
        %v910 = vpop.f32.mrf.mxu0
        %v911 = vadd.f32 0.0, %v910
        %v912 = vpop.f32.mrf.mxu0
        %v913 = vadd.f32 0.0, %v912
        %914 = vmatmul.bf16.gmra.mxu0 %v486
        %v915 = vpop.f32.mrf.mxu0
        %v916 = vadd.f32 0.0, %v915
        %v917 = vpop.f32.mrf.mxu0
        %v918 = vadd.f32 0.0, %v917
        %919 = vmatmul.bf16.gmra.mxu0 %v488
        %v920 = vpop.f32.mrf.mxu0
        %v921 = vadd.f32 0.0, %v920
        %v922 = vpop.f32.mrf.mxu0
        %v923 = vadd.f32 0.0, %v922
        %924 = vmatmul.bf16.gmra.mxu0 %v490
        %v925 = vpop.f32.mrf.mxu0
        %v926 = vadd.f32 0.0, %v925
        %v927 = vpop.f32.mrf.mxu0
        %v928 = vadd.f32 0.0, %v927
        %929 = vmatmul.bf16.gmra.mxu0 %v492
        %v930 = vpop.f32.mrf.mxu0
        %v931 = vadd.f32 0.0, %v930
        %v932 = vpop.f32.mrf.mxu0
        %v933 = vadd.f32 0.0, %v932
        %934 = vmatmul.bf16.gmra.mxu0 %v494
        %v935 = vpop.f32.mrf.mxu0
        %v936 = vadd.f32 0.0, %v935
        %v937 = vpop.f32.mrf.mxu0
        %v938 = vadd.f32 0.0, %v937
        %939 = vmatmul.bf16.gmra.mxu0 %v496
        %v940 = vpop.f32.mrf.mxu0
        %v941 = vadd.f32 0.0, %v940
        %v942 = vpop.f32.mrf.mxu0
        %v943 = vadd.f32 0.0, %v942
        %944 = vmatmul.bf16.gmra.mxu0 %v498
        %v945 = vpop.f32.mrf.mxu0
        %v946 = vadd.f32 0.0, %v945
        %v947 = vpop.f32.mrf.mxu0
        %v948 = vadd.f32 0.0, %v947
        %949 = vmatmul.bf16.gmra.mxu0 %v500
        %v950 = vpop.f32.mrf.mxu0
        %v951 = vadd.f32 0.0, %v950
        %v952 = vpop.f32.mrf.mxu0
        %v953 = vadd.f32 0.0, %v952
        %954 = vmatmul.bf16.gmra.mxu0 %v502
        %v955 = vpop.f32.mrf.mxu0
        %v956 = vadd.f32 0.0, %v955
        %v957 = vpop.f32.mrf.mxu0
        %v958 = vadd.f32 0.0, %v957
        %959 = vmatmul.bf16.gmra.mxu0 %v504
        %v960 = vpop.f32.mrf.mxu0
        %v961 = vadd.f32 0.0, %v960
        %v962 = vpop.f32.mrf.mxu0
        %v963 = vadd.f32 0.0, %v962
        %964 = vdwg.mxu0
        %965 = vmatpush.bf16.msra.mxu0 %v665
        %966 = vmatpush.bf16.msra.mxu0 %v663
        %967 = vmatpush.bf16.msra.mxu0 %v661
        %968 = vmatpush.bf16.msra.mxu0 %v659
        %969 = vmatpush.bf16.msra.mxu0 %v657
        %970 = vmatpush.bf16.msra.mxu0 %v655
        %971 = vmatpush.bf16.msra.mxu0 %v653
        %972 = vmatpush.bf16.msra.mxu0 %v651
        %973 = vmatmul.bf16.gmra.mxu0 %v475
        %v974 = vpop.f32.mrf.mxu0
        %v975 = vadd.f32 %v886, %v974
        %v976 = vpop.f32.mrf.mxu0
        %v977 = vadd.f32 %v888, %v976
        %978 = vmatmul.bf16.gmra.mxu0 %v477
        %v979 = vpop.f32.mrf.mxu0
        %v980 = vadd.f32 %v891, %v979
        %v981 = vpop.f32.mrf.mxu0
        %v982 = vadd.f32 %v893, %v981
        %983 = vmatmul.bf16.gmra.mxu0 %v479
        %v984 = vpop.f32.mrf.mxu0
        %v985 = vadd.f32 %v896, %v984
        %v986 = vpop.f32.mrf.mxu0
        %v987 = vadd.f32 %v898, %v986
        %988 = vmatmul.bf16.gmra.mxu0 %v481
        %v989 = vpop.f32.mrf.mxu0
        %v990 = vadd.f32 %v901, %v989
        %v991 = vpop.f32.mrf.mxu0
        %v992 = vadd.f32 %v903, %v991
        %993 = vmatmul.bf16.gmra.mxu0 %v483
        %v994 = vpop.f32.mrf.mxu0
        %v995 = vadd.f32 %v906, %v994
        %v996 = vpop.f32.mrf.mxu0
        %v997 = vadd.f32 %v908, %v996
        %998 = vmatmul.bf16.gmra.mxu0 %v485
        %v999 = vpop.f32.mrf.mxu0
        %v1000 = vadd.f32 %v911, %v999
        %v1001 = vpop.f32.mrf.mxu0
        %v1002 = vadd.f32 %v913, %v1001
        %1003 = vmatmul.bf16.gmra.mxu0 %v487
        %v1004 = vpop.f32.mrf.mxu0
        %v1005 = vadd.f32 %v916, %v1004
        %v1006 = vpop.f32.mrf.mxu0
        %v1007 = vadd.f32 %v918, %v1006
        %1008 = vmatmul.bf16.gmra.mxu0 %v489
        %v1009 = vpop.f32.mrf.mxu0
        %v1010 = vadd.f32 %v921, %v1009
        %v1011 = vpop.f32.mrf.mxu0
        %v1012 = vadd.f32 %v923, %v1011
        %1013 = vmatmul.bf16.gmra.mxu0 %v491
        %v1014 = vpop.f32.mrf.mxu0
        %v1015 = vadd.f32 %v926, %v1014
        %v1016 = vpop.f32.mrf.mxu0
        %v1017 = vadd.f32 %v928, %v1016
        %1018 = vmatmul.bf16.gmra.mxu0 %v493
        %v1019 = vpop.f32.mrf.mxu0
        %v1020 = vadd.f32 %v931, %v1019
        %v1021 = vpop.f32.mrf.mxu0
        %v1022 = vadd.f32 %v933, %v1021
        %1023 = vmatmul.bf16.gmra.mxu0 %v495
        %v1024 = vpop.f32.mrf.mxu0
        %v1025 = vadd.f32 %v936, %v1024
        %v1026 = vpop.f32.mrf.mxu0
        %v1027 = vadd.f32 %v938, %v1026
        %1028 = vmatmul.bf16.gmra.mxu0 %v497
        %v1029 = vpop.f32.mrf.mxu0
        %v1030 = vadd.f32 %v941, %v1029
        %v1031 = vpop.f32.mrf.mxu0
        %v1032 = vadd.f32 %v943, %v1031
        %1033 = vmatmul.bf16.gmra.mxu0 %v499
        %v1034 = vpop.f32.mrf.mxu0
        %v1035 = vadd.f32 %v946, %v1034
        %v1036 = vpop.f32.mrf.mxu0
        %v1037 = vadd.f32 %v948, %v1036
        %1038 = vmatmul.bf16.gmra.mxu0 %v501
        %v1039 = vpop.f32.mrf.mxu0
        %v1040 = vadd.f32 %v951, %v1039
        %v1041 = vpop.f32.mrf.mxu0
        %v1042 = vadd.f32 %v953, %v1041
        %1043 = vmatmul.bf16.gmra.mxu0 %v503
        %v1044 = vpop.f32.mrf.mxu0
        %v1045 = vadd.f32 %v956, %v1044
        %v1046 = vpop.f32.mrf.mxu0
        %v1047 = vadd.f32 %v958, %v1046
        %1048 = vmatmul.bf16.gmra.mxu0 %v505
        %v1049 = vpop.f32.mrf.mxu0
        %v1050 = vadd.f32 %v961, %v1049
        %v1051 = vpop.f32.mrf.mxu0
        %v1052 = vadd.f32 %v963, %v1051
        %1053 = vdwg.mxu0
        %v1054 = vadd.f32 %v797, %v799
        %v1055 = vadd.f32 %v1054, %v802
        %v1056 = vadd.f32 %v1055, %v804
        %v1057 = vadd.f32 %v1056, %v807
        %v1058 = vadd.f32 %v1057, %v809
        %v1059 = vadd.f32 %v1058, %v812
        %v1060 = vadd.f32 %v1059, %v814
        %v1061 = vadd.f32 %v1060, %v817
        %v1062 = vadd.f32 %v1061, %v819
        %v1063 = vadd.f32 %v1062, %v822
        %v1064 = vadd.f32 %v1063, %v824
        %v1065 = vadd.f32 %v1064, %v827
        %v1066 = vadd.f32 %v1065, %v829
        %v1067 = vadd.f32 %v1066, %v832
        %v1068 = vadd.f32 %v1067, %v834
        %v1069 = vadd.f32 %v1068, %v837
        %v1070 = vadd.f32 %v1069, %v839
        %v1071 = vadd.f32 %v1070, %v842
        %v1072 = vadd.f32 %v1071, %v844
        %v1073 = vadd.f32 %v1072, %v847
        %v1074 = vadd.f32 %v1073, %v849
        %v1075 = vadd.f32 %v1074, %v852
        %v1076 = vadd.f32 %v1075, %v854
        %v1077 = vadd.f32 %v1076, %v857
        %v1078 = vadd.f32 %v1077, %v859
        %v1079 = vadd.f32 %v1078, %v862
        %v1080 = vadd.f32 %v1079, %v864
        %v1081 = vadd.f32 %v1080, %v867
        %v1082 = vadd.f32 %v1081, %v869
        %v1083 = vadd.f32 %v1082, %v872
        %v1084 = vadd.f32 %v1083, %v874
        %v1085 = vrot.slane %v1084, 4
        %v1086 = vadd.f32 %v1084, %v1085
        %v1087 = vrot.slane %v1086, 2
        %v1088 = vadd.f32 %v1086, %v1087
        %v1089 = vrot.slane %v1088, 1
        %v1090 = vadd.f32 %v1088, %v1089
        %v1091 = vadd.f32 %v975, %v977
        %v1092 = vadd.f32 %v1091, %v980
        %v1093 = vadd.f32 %v1092, %v982
        %v1094 = vadd.f32 %v1093, %v985
        %v1095 = vadd.f32 %v1094, %v987
        %v1096 = vadd.f32 %v1095, %v990
        %v1097 = vadd.f32 %v1096, %v992
        %v1098 = vadd.f32 %v1097, %v995
        %v1099 = vadd.f32 %v1098, %v997
        %v1100 = vadd.f32 %v1099, %v1000
        %v1101 = vadd.f32 %v1100, %v1002
        %v1102 = vadd.f32 %v1101, %v1005
        %v1103 = vadd.f32 %v1102, %v1007
        %v1104 = vadd.f32 %v1103, %v1010
        %v1105 = vadd.f32 %v1104, %v1012
        %v1106 = vadd.f32 %v1105, %v1015
        %v1107 = vadd.f32 %v1106, %v1017
        %v1108 = vadd.f32 %v1107, %v1020
        %v1109 = vadd.f32 %v1108, %v1022
        %v1110 = vadd.f32 %v1109, %v1025
        %v1111 = vadd.f32 %v1110, %v1027
        %v1112 = vadd.f32 %v1111, %v1030
        %v1113 = vadd.f32 %v1112, %v1032
        %v1114 = vadd.f32 %v1113, %v1035
        %v1115 = vadd.f32 %v1114, %v1037
        %v1116 = vadd.f32 %v1115, %v1040
        %v1117 = vadd.f32 %v1116, %v1042
        %v1118 = vadd.f32 %v1117, %v1045
        %v1119 = vadd.f32 %v1118, %v1047
        %v1120 = vadd.f32 %v1119, %v1050
        %v1121 = vadd.f32 %v1120, %v1052
        %v1122 = vrot.slane %v1121, 4
        %v1123 = vadd.f32 %v1121, %v1122
        %v1124 = vrot.slane %v1123, 2
        %v1125 = vadd.f32 %v1123, %v1124
        %v1126 = vrot.slane %v1125, 1
        %v1127 = vadd.f32 %v1125, %v1126
        %v1128 = vmul.f32 %v797, %v797
        %v1129 = vmul.f32 %v975, %v975
        %v1130 = vmul.f32 %v799, %v799
        %v1131 = vmul.f32 %v977, %v977
        %v1132 = vmul.f32 %v802, %v802
        %v1133 = vmul.f32 %v980, %v980
        %v1134 = vmul.f32 %v804, %v804
        %v1135 = vmul.f32 %v982, %v982
        %v1136 = vmul.f32 %v807, %v807
        %v1137 = vmul.f32 %v985, %v985
        %v1138 = vmul.f32 %v809, %v809
        %v1139 = vmul.f32 %v987, %v987
        %v1140 = vmul.f32 %v812, %v812
        %v1141 = vmul.f32 %v990, %v990
        %v1142 = vmul.f32 %v814, %v814
        %v1143 = vmul.f32 %v992, %v992
        %v1144 = vmul.f32 %v817, %v817
        %v1145 = vmul.f32 %v995, %v995
        %v1146 = vmul.f32 %v819, %v819
        %v1147 = vmul.f32 %v997, %v997
        %v1148 = vmul.f32 %v822, %v822
        %v1149 = vmul.f32 %v1000, %v1000
        %v1150 = vmul.f32 %v824, %v824
        %v1151 = vmul.f32 %v1002, %v1002
        %v1152 = vmul.f32 %v827, %v827
        %v1153 = vmul.f32 %v1005, %v1005
        %v1154 = vmul.f32 %v829, %v829
        %v1155 = vmul.f32 %v1007, %v1007
        %v1156 = vmul.f32 %v832, %v832
        %v1157 = vmul.f32 %v1010, %v1010
        %v1158 = vmul.f32 %v834, %v834
        %v1159 = vmul.f32 %v1012, %v1012
        %v1160 = vmul.f32 %v837, %v837
        %v1161 = vmul.f32 %v1015, %v1015
        %v1162 = vmul.f32 %v839, %v839
        %v1163 = vmul.f32 %v1017, %v1017
        %v1164 = vmul.f32 %v842, %v842
        %v1165 = vmul.f32 %v1020, %v1020
        %v1166 = vmul.f32 %v844, %v844
        %v1167 = vmul.f32 %v1022, %v1022
        %v1168 = vmul.f32 %v847, %v847
        %v1169 = vmul.f32 %v1025, %v1025
        %v1170 = vmul.f32 %v849, %v849
        %v1171 = vmul.f32 %v1027, %v1027
        %v1172 = vmul.f32 %v852, %v852
        %v1173 = vmul.f32 %v1030, %v1030
        %v1174 = vmul.f32 %v854, %v854
        %v1175 = vmul.f32 %v1032, %v1032
        %v1176 = vmul.f32 %v857, %v857
        %v1177 = vmul.f32 %v1035, %v1035
        %v1178 = vmul.f32 %v859, %v859
        %v1179 = vmul.f32 %v1037, %v1037
        %v1180 = vmul.f32 %v862, %v862
        %v1181 = vmul.f32 %v1040, %v1040
        %v1182 = vmul.f32 %v864, %v864
        %v1183 = vmul.f32 %v1042, %v1042
        %v1184 = vmul.f32 %v867, %v867
        %v1185 = vmul.f32 %v1045, %v1045
        %v1186 = vmul.f32 %v869, %v869
        %v1187 = vmul.f32 %v1047, %v1047
        %v1188 = vmul.f32 %v872, %v872
        %v1189 = vmul.f32 %v1050, %v1050
        %v1190 = vmul.f32 %v874, %v874
        %v1191 = vmul.f32 %v1052, %v1052
        %v1192 = vadd.f32 %v1128, %v1130
        %v1193 = vadd.f32 %v1192, %v1132
        %v1194 = vadd.f32 %v1193, %v1134
        %v1195 = vadd.f32 %v1194, %v1136
        %v1196 = vadd.f32 %v1195, %v1138
        %v1197 = vadd.f32 %v1196, %v1140
        %v1198 = vadd.f32 %v1197, %v1142
        %v1199 = vadd.f32 %v1198, %v1144
        %v1200 = vadd.f32 %v1199, %v1146
        %v1201 = vadd.f32 %v1200, %v1148
        %v1202 = vadd.f32 %v1201, %v1150
        %v1203 = vadd.f32 %v1202, %v1152
        %v1204 = vadd.f32 %v1203, %v1154
        %v1205 = vadd.f32 %v1204, %v1156
        %v1206 = vadd.f32 %v1205, %v1158
        %v1207 = vadd.f32 %v1206, %v1160
        %v1208 = vadd.f32 %v1207, %v1162
        %v1209 = vadd.f32 %v1208, %v1164
        %v1210 = vadd.f32 %v1209, %v1166
        %v1211 = vadd.f32 %v1210, %v1168
        %v1212 = vadd.f32 %v1211, %v1170
        %v1213 = vadd.f32 %v1212, %v1172
        %v1214 = vadd.f32 %v1213, %v1174
        %v1215 = vadd.f32 %v1214, %v1176
        %v1216 = vadd.f32 %v1215, %v1178
        %v1217 = vadd.f32 %v1216, %v1180
        %v1218 = vadd.f32 %v1217, %v1182
        %v1219 = vadd.f32 %v1218, %v1184
        %v1220 = vadd.f32 %v1219, %v1186
        %v1221 = vadd.f32 %v1220, %v1188
        %v1222 = vadd.f32 %v1221, %v1190
        %v1223 = vrot.slane %v1222, 4
        %v1224 = vadd.f32 %v1222, %v1223
        %v1225 = vrot.slane %v1224, 2
        %v1226 = vadd.f32 %v1224, %v1225
        %v1227 = vrot.slane %v1226, 1
        %v1228 = vadd.f32 %v1226, %v1227
        %v1229 = vadd.f32 %v1129, %v1131
        %v1230 = vadd.f32 %v1229, %v1133
        %v1231 = vadd.f32 %v1230, %v1135
        %v1232 = vadd.f32 %v1231, %v1137
        %v1233 = vadd.f32 %v1232, %v1139
        %v1234 = vadd.f32 %v1233, %v1141
        %v1235 = vadd.f32 %v1234, %v1143
        %v1236 = vadd.f32 %v1235, %v1145
        %v1237 = vadd.f32 %v1236, %v1147
        %v1238 = vadd.f32 %v1237, %v1149
        %v1239 = vadd.f32 %v1238, %v1151
        %v1240 = vadd.f32 %v1239, %v1153
        %v1241 = vadd.f32 %v1240, %v1155
        %v1242 = vadd.f32 %v1241, %v1157
        %v1243 = vadd.f32 %v1242, %v1159
        %v1244 = vadd.f32 %v1243, %v1161
        %v1245 = vadd.f32 %v1244, %v1163
        %v1246 = vadd.f32 %v1245, %v1165
        %v1247 = vadd.f32 %v1246, %v1167
        %v1248 = vadd.f32 %v1247, %v1169
        %v1249 = vadd.f32 %v1248, %v1171
        %v1250 = vadd.f32 %v1249, %v1173
        %v1251 = vadd.f32 %v1250, %v1175
        %v1252 = vadd.f32 %v1251, %v1177
        %v1253 = vadd.f32 %v1252, %v1179
        %v1254 = vadd.f32 %v1253, %v1181
        %v1255 = vadd.f32 %v1254, %v1183
        %v1256 = vadd.f32 %v1255, %v1185
        %v1257 = vadd.f32 %v1256, %v1187
        %v1258 = vadd.f32 %v1257, %v1189
        %v1259 = vadd.f32 %v1258, %v1191
        %v1260 = vrot.slane %v1259, 4
        %v1261 = vadd.f32 %v1259, %v1260
        %v1262 = vrot.slane %v1261, 2
        %v1263 = vadd.f32 %v1261, %v1262
        %v1264 = vrot.slane %v1263, 1
        %v1265 = vadd.f32 %v1263, %v1264
        %v1266 = vmul.f32 %v1090, 0.00390625
        %v1267 = vmul.f32 %v1127, 0.00390625
        %v1268 = vmul.f32 %v1228, 0.00390625
        %v1269 = vmul.f32 %v1265, 0.00390625
        %v1270 = vmul.f32 %v1266, %v1266
        %v1271 = vmul.f32 %v1267, %v1267
        %v1272 = vsub.f32 %v1268, %v1270
        %v1273 = vsub.f32 %v1269, %v1271
        %v1274 = vmax.f32 %v1272, 0.0
        %v1275 = vmax.f32 %v1273, 0.0
        %v1276 = vld [vmem:[%s264] sm:$0x3]
        %v1277 = vadd.f32 %v1274, 1e-05
        %v1278 = vadd.f32 %v1275, 1e-05
        %v1279 = vrsqrt.pop %v1277
        %v1280 = vmul.f32 %v1279, %v1277
        %v1281 = vmul.f32 %v1280, %v1279
        %v1282 = vmul.f32 0.5, %v1281
        %v1283 = vsub.f32 1.5, %v1282
        %v1284 = vmul.f32 %v1279, %v1283
        %vm1285 = vweird.f32 %v1277
        %vm1286 = vweird.f32 %v1279
        %vm1287 = vmor %vm1285, %vm1286
        %v1288 = vsel %vm1287, %v1279, %v1284
        %v1289 = vrsqrt.pop %v1278
        %v1290 = vmul.f32 %v1289, %v1278
        %v1291 = vmul.f32 %v1290, %v1289
        %v1292 = vmul.f32 0.5, %v1291
        %v1293 = vsub.f32 1.5, %v1292
        %v1294 = vmul.f32 %v1289, %v1293
        %vm1295 = vweird.f32 %v1278
        %vm1296 = vweird.f32 %v1289
        %vm1297 = vmor %vm1295, %vm1296
        %v1298 = vsel %vm1297, %v1289, %v1294
        %v1301 = vrot.slane %v1298, 7
        %vm1302 = vcmask 1040384
        %v1303 = vsel %vm1302, %v1288, %v1301
        %v1305 = vmul.f32 %v1276, %v1303
        %v1306 = vld [vmem:[%s274] sm:$0x3]
        %v1308 = vperm.slane %v1305, 0
        %v1309 = vperm.slane %v1305, 1
        %v1312 = vmul.f32 %v1266, %v1308
        %v1313 = vmul.f32 %v1267, %v1309
        %v1316 = vrot.slane %v1313, 7
        %v1317 = vsel %vm1302, %v1312, %v1316
        %v1319 = vsub.f32 %v1306, %v1317
        %v1320 = vmul.f32 %v797, %v1308
        %v1321 = vmul.f32 %v975, %v1309
        %v1322 = vmul.f32 %v799, %v1308
        %v1323 = vmul.f32 %v977, %v1309
        %v1324 = vmul.f32 %v802, %v1308
        %v1325 = vmul.f32 %v980, %v1309
        %v1326 = vmul.f32 %v804, %v1308
        %v1327 = vmul.f32 %v982, %v1309
        %v1328 = vmul.f32 %v807, %v1308
        %v1329 = vmul.f32 %v985, %v1309
        %v1330 = vmul.f32 %v809, %v1308
        %v1331 = vmul.f32 %v987, %v1309
        %v1332 = vmul.f32 %v812, %v1308
        %v1333 = vmul.f32 %v990, %v1309
        %v1334 = vmul.f32 %v814, %v1308
        %v1335 = vmul.f32 %v992, %v1309
        %v1336 = vmul.f32 %v817, %v1308
        %v1337 = vmul.f32 %v995, %v1309
        %v1338 = vmul.f32 %v819, %v1308
        %v1339 = vmul.f32 %v997, %v1309
        %v1340 = vmul.f32 %v822, %v1308
        %v1341 = vmul.f32 %v1000, %v1309
        %v1342 = vmul.f32 %v824, %v1308
        %v1343 = vmul.f32 %v1002, %v1309
        %v1344 = vmul.f32 %v827, %v1308
        %v1345 = vmul.f32 %v1005, %v1309
        %v1346 = vmul.f32 %v829, %v1308
        %v1347 = vmul.f32 %v1007, %v1309
        %v1348 = vmul.f32 %v832, %v1308
        %v1349 = vmul.f32 %v1010, %v1309
        %v1350 = vmul.f32 %v834, %v1308
        %v1351 = vmul.f32 %v1012, %v1309
        %v1352 = vmul.f32 %v837, %v1308
        %v1353 = vmul.f32 %v1015, %v1309
        %v1354 = vmul.f32 %v839, %v1308
        %v1355 = vmul.f32 %v1017, %v1309
        %v1356 = vmul.f32 %v842, %v1308
        %v1357 = vmul.f32 %v1020, %v1309
        %v1358 = vmul.f32 %v844, %v1308
        %v1359 = vmul.f32 %v1022, %v1309
        %v1360 = vmul.f32 %v847, %v1308
        %v1361 = vmul.f32 %v1025, %v1309
        %v1362 = vmul.f32 %v849, %v1308
        %v1363 = vmul.f32 %v1027, %v1309
        %v1364 = vmul.f32 %v852, %v1308
        %v1365 = vmul.f32 %v1030, %v1309
        %v1366 = vmul.f32 %v854, %v1308
        %v1367 = vmul.f32 %v1032, %v1309
        %v1368 = vmul.f32 %v857, %v1308
        %v1369 = vmul.f32 %v1035, %v1309
        %v1370 = vmul.f32 %v859, %v1308
        %v1371 = vmul.f32 %v1037, %v1309
        %v1372 = vmul.f32 %v862, %v1308
        %v1373 = vmul.f32 %v1040, %v1309
        %v1374 = vmul.f32 %v864, %v1308
        %v1375 = vmul.f32 %v1042, %v1309
        %v1376 = vmul.f32 %v867, %v1308
        %v1377 = vmul.f32 %v1045, %v1309
        %v1378 = vmul.f32 %v869, %v1308
        %v1379 = vmul.f32 %v1047, %v1309
        %v1380 = vmul.f32 %v872, %v1308
        %v1381 = vmul.f32 %v1050, %v1309
        %v1382 = vmul.f32 %v874, %v1308
        %v1383 = vmul.f32 %v1052, %v1309
        %v1385 = vperm.slane %v1319, 0
        %v1386 = vperm.slane %v1319, 1
        %v1389 = vadd.f32 %v1320, %v1385
        %v1390 = vadd.f32 %v1321, %v1386
        %v1391 = vadd.f32 %v1322, %v1385
        %v1392 = vadd.f32 %v1323, %v1386
        %v1393 = vadd.f32 %v1324, %v1385
        %v1394 = vadd.f32 %v1325, %v1386
        %v1395 = vadd.f32 %v1326, %v1385
        %v1396 = vadd.f32 %v1327, %v1386
        %v1397 = vadd.f32 %v1328, %v1385
        %v1398 = vadd.f32 %v1329, %v1386
        %v1399 = vadd.f32 %v1330, %v1385
        %v1400 = vadd.f32 %v1331, %v1386
        %v1401 = vadd.f32 %v1332, %v1385
        %v1402 = vadd.f32 %v1333, %v1386
        %v1403 = vadd.f32 %v1334, %v1385
        %v1404 = vadd.f32 %v1335, %v1386
        %v1405 = vadd.f32 %v1336, %v1385
        %v1406 = vadd.f32 %v1337, %v1386
        %v1407 = vadd.f32 %v1338, %v1385
        %v1408 = vadd.f32 %v1339, %v1386
        %v1409 = vadd.f32 %v1340, %v1385
        %v1410 = vadd.f32 %v1341, %v1386
        %v1411 = vadd.f32 %v1342, %v1385
        %v1412 = vadd.f32 %v1343, %v1386
        %v1413 = vadd.f32 %v1344, %v1385
        %v1414 = vadd.f32 %v1345, %v1386
        %v1415 = vadd.f32 %v1346, %v1385
        %v1416 = vadd.f32 %v1347, %v1386
        %v1417 = vadd.f32 %v1348, %v1385
        %v1418 = vadd.f32 %v1349, %v1386
        %v1419 = vadd.f32 %v1350, %v1385
        %v1420 = vadd.f32 %v1351, %v1386
        %v1421 = vadd.f32 %v1352, %v1385
        %v1422 = vadd.f32 %v1353, %v1386
        %v1423 = vadd.f32 %v1354, %v1385
        %v1424 = vadd.f32 %v1355, %v1386
        %v1425 = vadd.f32 %v1356, %v1385
        %v1426 = vadd.f32 %v1357, %v1386
        %v1427 = vadd.f32 %v1358, %v1385
        %v1428 = vadd.f32 %v1359, %v1386
        %v1429 = vadd.f32 %v1360, %v1385
        %v1430 = vadd.f32 %v1361, %v1386
        %v1431 = vadd.f32 %v1362, %v1385
        %v1432 = vadd.f32 %v1363, %v1386
        %v1433 = vadd.f32 %v1364, %v1385
        %v1434 = vadd.f32 %v1365, %v1386
        %v1435 = vadd.f32 %v1366, %v1385
        %v1436 = vadd.f32 %v1367, %v1386
        %v1437 = vadd.f32 %v1368, %v1385
        %v1438 = vadd.f32 %v1369, %v1386
        %v1439 = vadd.f32 %v1370, %v1385
        %v1440 = vadd.f32 %v1371, %v1386
        %v1441 = vadd.f32 %v1372, %v1385
        %v1442 = vadd.f32 %v1373, %v1386
        %v1443 = vadd.f32 %v1374, %v1385
        %v1444 = vadd.f32 %v1375, %v1386
        %v1445 = vadd.f32 %v1376, %v1385
        %v1446 = vadd.f32 %v1377, %v1386
        %v1447 = vadd.f32 %v1378, %v1385
        %v1448 = vadd.f32 %v1379, %v1386
        %v1449 = vadd.f32 %v1380, %v1385
        %v1450 = vadd.f32 %v1381, %v1386
        %v1451 = vadd.f32 %v1382, %v1385
        %v1452 = vadd.f32 %v1383, %v1386
        %v1453 = vmax.f32 %v1389, 0.0
        %v1454 = vmax.f32 %v1390, 0.0
        %v1455 = vmax.f32 %v1391, 0.0
        %v1456 = vmax.f32 %v1392, 0.0
        %v1457 = vmax.f32 %v1393, 0.0
        %v1458 = vmax.f32 %v1394, 0.0
        %v1459 = vmax.f32 %v1395, 0.0
        %v1460 = vmax.f32 %v1396, 0.0
        %v1461 = vmax.f32 %v1397, 0.0
        %v1462 = vmax.f32 %v1398, 0.0
        %v1463 = vmax.f32 %v1399, 0.0
        %v1464 = vmax.f32 %v1400, 0.0
        %v1465 = vmax.f32 %v1401, 0.0
        %v1466 = vmax.f32 %v1402, 0.0
        %v1467 = vmax.f32 %v1403, 0.0
        %v1468 = vmax.f32 %v1404, 0.0
        %v1469 = vmax.f32 %v1405, 0.0
        %v1470 = vmax.f32 %v1406, 0.0
        %v1471 = vmax.f32 %v1407, 0.0
        %v1472 = vmax.f32 %v1408, 0.0
        %v1473 = vmax.f32 %v1409, 0.0
        %v1474 = vmax.f32 %v1410, 0.0
        %v1475 = vmax.f32 %v1411, 0.0
        %v1476 = vmax.f32 %v1412, 0.0
        %v1477 = vmax.f32 %v1413, 0.0
        %v1478 = vmax.f32 %v1414, 0.0
        %v1479 = vmax.f32 %v1415, 0.0
        %v1480 = vmax.f32 %v1416, 0.0
        %v1481 = vmax.f32 %v1417, 0.0
        %v1482 = vmax.f32 %v1418, 0.0
        %v1483 = vmax.f32 %v1419, 0.0
        %v1484 = vmax.f32 %v1420, 0.0
        %v1485 = vmax.f32 %v1421, 0.0
        %v1486 = vmax.f32 %v1422, 0.0
        %v1487 = vmax.f32 %v1423, 0.0
        %v1488 = vmax.f32 %v1424, 0.0
        %v1489 = vmax.f32 %v1425, 0.0
        %v1490 = vmax.f32 %v1426, 0.0
        %v1491 = vmax.f32 %v1427, 0.0
        %v1492 = vmax.f32 %v1428, 0.0
        %v1493 = vmax.f32 %v1429, 0.0
        %v1494 = vmax.f32 %v1430, 0.0
        %v1495 = vmax.f32 %v1431, 0.0
        %v1496 = vmax.f32 %v1432, 0.0
        %v1497 = vmax.f32 %v1433, 0.0
        %v1498 = vmax.f32 %v1434, 0.0
        %v1499 = vmax.f32 %v1435, 0.0
        %v1500 = vmax.f32 %v1436, 0.0
        %v1501 = vmax.f32 %v1437, 0.0
        %v1502 = vmax.f32 %v1438, 0.0
        %v1503 = vmax.f32 %v1439, 0.0
        %v1504 = vmax.f32 %v1440, 0.0
        %v1505 = vmax.f32 %v1441, 0.0
        %v1506 = vmax.f32 %v1442, 0.0
        %v1507 = vmax.f32 %v1443, 0.0
        %v1508 = vmax.f32 %v1444, 0.0
        %v1509 = vmax.f32 %v1445, 0.0
        %v1510 = vmax.f32 %v1446, 0.0
        %v1511 = vmax.f32 %v1447, 0.0
        %v1512 = vmax.f32 %v1448, 0.0
        %v1513 = vmax.f32 %v1449, 0.0
        %v1514 = vmax.f32 %v1450, 0.0
        %v1515 = vmax.f32 %v1451, 0.0
        %v1516 = vmax.f32 %v1452, 0.0
        %v1517 = vpack.c.bf16 %v1454, %v1453
        %v1518 = vpack.c.bf16 %v1456, %v1455
        %v1519 = vpack.c.bf16 %v1458, %v1457
        %v1520 = vpack.c.bf16 %v1460, %v1459
        %v1521 = vpack.c.bf16 %v1462, %v1461
        %v1522 = vpack.c.bf16 %v1464, %v1463
        %v1523 = vpack.c.bf16 %v1466, %v1465
        %v1524 = vpack.c.bf16 %v1468, %v1467
        %v1525 = vpack.c.bf16 %v1470, %v1469
        %v1526 = vpack.c.bf16 %v1472, %v1471
        %v1527 = vpack.c.bf16 %v1474, %v1473
        %v1528 = vpack.c.bf16 %v1476, %v1475
        %v1529 = vpack.c.bf16 %v1478, %v1477
        %v1530 = vpack.c.bf16 %v1480, %v1479
        %v1531 = vpack.c.bf16 %v1482, %v1481
        %v1532 = vpack.c.bf16 %v1484, %v1483
        %v1533 = vpack.c.bf16 %v1486, %v1485
        %v1534 = vpack.c.bf16 %v1488, %v1487
        %v1535 = vpack.c.bf16 %v1490, %v1489
        %v1536 = vpack.c.bf16 %v1492, %v1491
        %v1537 = vpack.c.bf16 %v1494, %v1493
        %v1538 = vpack.c.bf16 %v1496, %v1495
        %v1539 = vpack.c.bf16 %v1498, %v1497
        %v1540 = vpack.c.bf16 %v1500, %v1499
        %v1541 = vpack.c.bf16 %v1502, %v1501
        %v1542 = vpack.c.bf16 %v1504, %v1503
        %v1543 = vpack.c.bf16 %v1506, %v1505
        %v1544 = vpack.c.bf16 %v1508, %v1507
        %v1545 = vpack.c.bf16 %v1510, %v1509
        %v1546 = vpack.c.bf16 %v1512, %v1511
        %v1547 = vpack.c.bf16 %v1514, %v1513
        %v1548 = vpack.c.bf16 %v1516, %v1515
        %1549 = vst [vmem:[%s309] sm:$0xff] %v1517
        %1550 = vst [vmem:[%s309 + $0x8] sm:$0xff] %v1518
        %1551 = vst [vmem:[%s309 + $0x10] sm:$0xff] %v1519
        %1552 = vst [vmem:[%s309 + $0x18] sm:$0xff] %v1520
        %1553 = vst [vmem:[%s309 + $0x20] sm:$0xff] %v1521
        %1554 = vst [vmem:[%s309 + $0x28] sm:$0xff] %v1522
        %1555 = vst [vmem:[%s309 + $0x30] sm:$0xff] %v1523
        %1556 = vst [vmem:[%s309 + $0x38] sm:$0xff] %v1524
        %1557 = vst [vmem:[%s309 + $0x40] sm:$0xff] %v1525
        %1558 = vst [vmem:[%s309 + $0x48] sm:$0xff] %v1526
        %1559 = vst [vmem:[%s309 + $0x50] sm:$0xff] %v1527
        %1560 = vst [vmem:[%s309 + $0x58] sm:$0xff] %v1528
        %1561 = vst [vmem:[%s309 + $0x60] sm:$0xff] %v1529
        %1562 = vst [vmem:[%s309 + $0x68] sm:$0xff] %v1530
        %1563 = vst [vmem:[%s309 + $0x70] sm:$0xff] %v1531
        %1564 = vst [vmem:[%s309 + $0x78] sm:$0xff] %v1532
        %1565 = vst [vmem:[%s309 + $0x80] sm:$0xff] %v1533
        %1566 = vst [vmem:[%s309 + $0x88] sm:$0xff] %v1534
        %1567 = vst [vmem:[%s309 + $0x90] sm:$0xff] %v1535
        %1568 = vst [vmem:[%s309 + $0x98] sm:$0xff] %v1536
        %1569 = vst [vmem:[%s309 + $0xa0] sm:$0xff] %v1537
        %1570 = vst [vmem:[%s309 + $0xa8] sm:$0xff] %v1538
        %1571 = vst [vmem:[%s309 + $0xb0] sm:$0xff] %v1539
        %1572 = vst [vmem:[%s309 + $0xb8] sm:$0xff] %v1540
        %1573 = vst [vmem:[%s309 + $0xc0] sm:$0xff] %v1541
        %1574 = vst [vmem:[%s309 + $0xc8] sm:$0xff] %v1542
        %1575 = vst [vmem:[%s309 + $0xd0] sm:$0xff] %v1543
        %1576 = vst [vmem:[%s309 + $0xd8] sm:$0xff] %v1544
        %1577 = vst [vmem:[%s309 + $0xe0] sm:$0xff] %v1545
        %1578 = vst [vmem:[%s309 + $0xe8] sm:$0xff] %v1546
        %1579 = vst [vmem:[%s309 + $0xf0] sm:$0xff] %v1547
        %1580 = vst [vmem:[%s309 + $0xf8] sm:$0xff] %v1548
        %s1581 = sand.u32 %s132, 1
        %s1582 = scalar_lea.sflag [#allocation4], %s1581
        %s1583 = sand.u32 %s132, 1
        %s1584 = smul.addr %s1583, 256
        %s1585 = scalar_lea.vmem [#allocation10], %s1584
        // Predicated region
        $region53: #{tpu_custom_call.1} parent=35 // pred_check
          %p1586 = pneg %p142
        $region54: #{tpu_custom_call.1} parent=35 // pred_check_branch
          %1588 = sbr.rel (%p1586) target = $region56
        $region55: #{tpu_custom_call.1} parent=35 // pred_region
          %s1589 = smul.u32 2, %s25
          %1591 = vsyncadd %s1582, 0
          %s1592 = smul.addr %s1589, 4
          %s1593 = scalar_lea.hbm %s4, %s1592
          %s1594 = sshll.u32 %s1585, 4
          %s1595 = int_to_ptr.vmem [resolvable:$true] %s1594
          %s1596 = sshll.u32 %s1593, 4
          %s1597 = int_to_ptr.hbm [resolvable:$true] %s1596
          %1602 = dma.vmem_to_hbm [thread:$0]  %s1595, 4096, %s1597, %s1582, 128, 256, 8
        $region56: #{tpu_custom_call.1} parent=35 // pred_fallthru
          _
      $region36: #{tpu_custom_call.1} parent=5 // pred_fallthru
        _
      %p1603 = scmp.le.s32.totalorder 2, %s20
      // Predicated region
      $region57: #{tpu_custom_call.1} parent=5 // pred_check
        %p1604 = pneg %p1603
      $region58: #{tpu_custom_call.1} parent=5 // pred_check_branch
        %1606 = sbr.rel (%p1604) target = $region60
      $region59: #{tpu_custom_call.1} parent=5 // pred_region
        %s1607 = ssub.s32 %s20, 2
        // Predicated region
        $region61: #{tpu_custom_call.1} parent=59 // pred_check
          %p1608 = pneg %p148
        $region62: #{tpu_custom_call.1} parent=59 // pred_check_branch
          %1610 = sbr.rel (%p1608) target = $region64
        $region63: #{tpu_custom_call.1} parent=59 // pred_region
          %s1611 = sand.u32 %s133, 1
          %s1612 = scalar_lea.sflag [#allocation4], %s1611
          %s1613 = sand.u32 %s133, 1
          %s1614 = smul.addr %s1613, 256
          %s1615 = scalar_lea.vmem [#allocation10], %s1614
          %1617 = dma.done %s1612, 4096
        $region64: #{tpu_custom_call.1} parent=59 // pred_fallthru
          _
      $region60: #{tpu_custom_call.1} parent=5 // pred_fallthru
        _
    $region6: #{tpu_custom_call.1} parent=1 // loop_footer
      %s24 = sadd.s32 1, %s20
    $region7: #{tpu_custom_call.1} parent=1 // loop_footer_branch
      %19 = sbr.rel target = $region3
    $region8: #{tpu_custom_call.1} parent=1 // loop_exit
      _
    %1618 = vsyncpa [#allocation3], 1
    %s1619 = scalar_lea.sflag [#allocation3], 1
    %1620 = vsyncpa %s1619, 1
    %1621 = vsyncpa [#allocation6], 1
    %s1622 = scalar_lea.sflag [#allocation6], 1
    %1623 = vsyncpa %s1622, 1
    %1624 = vsyncpa [#allocation9], 1
    %s1625 = scalar_lea.sflag [#allocation9], 1
    %1626 = vsyncpa %s1625, 1
    %1627 = vsyncpa [#allocation4], 1
    %s1628 = scalar_lea.sflag [#allocation4], 1
    %1629 = vsyncpa %s1628, 1

</llo_original>
